<compile_context>
chip_gen: v7x
topology: tpu7x:2x2x1
jax: 0.10.0
libtpu: 0.0.40
codegen_flags: <defaults>
</compile_context>

<pallas_src>
import jax
import jax.numpy as jnp
from jax import lax
from jax.experimental import pallas as pl
from jax.experimental.pallas import tpu as pltpu

NUM_HEADS = 4
HIDDEN = 32
HEAD_DIM = HIDDEN // NUM_HEADS      # 8
SEQ = 8
BATCH = 2
FF = HIDDEN * 4                     # 128
EPS = 1e-5                          # torch.nn.LayerNorm default

# rows of the packed (16, 128) small-vector slab
(_R_BQ, _R_BK, _R_BV, _R_BO, _R_B1, _R_B2,
 _R_G1, _R_BE1, _R_G2, _R_BE2, _R_AMASK) = range(11)
VEC_ROWS = 16
VEC_LANES = 128

assert SEQ & (SEQ - 1) == 0 and HEAD_DIM & (HEAD_DIM - 1) == 0, \
    "block-mask construction uses shifts; SEQ and HEAD_DIM must be powers of two"
_SH_S = SEQ.bit_length() - 1        # log2(SEQ)
_SH_D = HEAD_DIM.bit_length() - 1   # log2(HEAD_DIM)


def _layernorm(h, gamma, beta):
    # biased variance + eps inside rsqrt, matching torch.nn.LayerNorm
    mu = jnp.mean(h, axis=-1, keepdims=True)
    xc = h - mu
    var = jnp.mean(xc * xc, axis=-1, keepdims=True)
    return xc * lax.rsqrt(var + EPS) * gamma + beta


def encoder_layer_kernel(x_ref, wqkvo_ref, w1_ref, w2_ref, vec_ref, o_ref):
    B, S, H, NH, HD = BATCH, SEQ, HIDDEN, NUM_HEADS, HEAD_DIM
    M = NH * S                       # score columns per (b, q) row

    x = x_ref[...]                                           # (B*S, H)

    # --- packed small vectors (single slab -> one DMA descriptor) -----------------
    bq  = vec_ref[_R_BQ:_R_BQ + 1, 0:H]                      # already scaled by 1/sqrt(HD)
    bk  = vec_ref[_R_BK:_R_BK + 1, 0:H]
    bv  = vec_ref[_R_BV:_R_BV + 1, 0:H]
    bo  = vec_ref[_R_BO:_R_BO + 1, 0:H]
    b1  = vec_ref[_R_B1:_R_B1 + 1, 0:FF]
    b2  = vec_ref[_R_B2:_R_B2 + 1, 0:H]
    g1  = vec_ref[_R_G1:_R_G1 + 1, 0:H]
    be1 = vec_ref[_R_BE1:_R_BE1 + 1, 0:H]
    g2  = vec_ref[_R_G2:_R_G2 + 1, 0:H]
    be2 = vec_ref[_R_BE2:_R_BE2 + 1, 0:H]
    amask = vec_ref[_R_AMASK:_R_AMASK + B, 0:M]              # (B, NH*S) additive mask

    # --- Q/K/V: three folded 2-D matmuls on the (B*S, H) slab ---------------------
    # (1/sqrt(HD) folded into Wq / bq at pack time -> no in-kernel scale multiply)
    q2d = jnp.dot(x, wqkvo_ref[0], preferred_element_type=jnp.float32) + bq
    k2d = jnp.dot(x, wqkvo_ref[1], preferred_element_type=jnp.float32) + bk
    v2d = jnp.dot(x, wqkvo_ref[2], preferred_element_type=jnp.float32) + bv

    q3 = q2d.reshape(B, S, H)        # leading-dim splits only (no lane/sublane moves)
    k3 = k2d.reshape(B, S, H)
    v3 = v2d.reshape(B, S, H)

    # --- head-block selector masks (built once from iota, hoisted; cheap VPU) -----
    # kvmask[h*S+k, h'*HD+d] = 1 iff h == h'
    rows = lax.broadcasted_iota(jnp.int32, (M, H), 0)
    cols = lax.broadcasted_iota(jnp.int32, (M, H), 1)
    kvmask = jnp.where((rows >> _SH_S) == (cols >> _SH_D), 1.0, 0.0)
    # segmat[h*S+k, h'*S+k'] = 1 iff h == h'   (per-head softmax denominator sums)
    rows2 = lax.broadcasted_iota(jnp.int32, (M, M), 0)
    cols2 = lax.broadcasted_iota(jnp.int32, (M, M), 1)
    segmat = jnp.where((rows2 >> _SH_S) == (cols2 >> _SH_S), 1.0, 0.0)

    # --- block-diagonal expanded K, V: Km[b, h*S+k, :] = k3[b, k, :] * head-h cols -
    km = jnp.concatenate([k3] * NH, axis=1) * kvmask[None]   # (B, NH*S, H)
    vm = jnp.concatenate([v3] * NH, axis=1) * kvmask[None]   # (B, NH*S, H)

    # --- attention scores for all heads at once: s[b, q, h*S+k] -------------------
    s = jnp.einsum("bqd,bmd->bqm", q3, km,
                   preferred_element_type=jnp.float32)       # (B, S, NH*S)
    s = s + amask[:, None, :]                                # additive key mask

    # segmented softmax over each head's S keys
    # (a per-(b,q)-row max is constant within every head segment -> still stable)
    m = jnp.max(s, axis=-1, keepdims=True)
    p = jnp.exp(s - m)                                       # masked keys -> exp(-1e30) == 0
    p2d = p.reshape(B * S, M)
    den = jnp.dot(p2d, segmat, preferred_element_type=jnp.float32)  # per-head sums, lane-replicated
    pn = p2d * pl.reciprocal(jnp.maximum(den, 1e-30), approx=True)
    pn3 = pn.reshape(B, S, M)

    # --- context: columns come out directly in "concatenated heads" layout --------
    ctx = jnp.einsum("bqm,bmc->bqc", pn3, vm,
                     preferred_element_type=jnp.float32)     # (B, S, H)
    ctx2d = ctx.reshape(B * S, H)

    # --- output projection: one folded (B*S, H) @ (H, H) matmul -------------------
    attn = jnp.dot(ctx2d, wqkvo_ref[3], preferred_element_type=jnp.float32) + bo

    # --- residual + LayerNorm 1 ----------------------------------------------------
    h1 = _layernorm(x + attn, g1, be1)

    # --- FeedForward: relu(h1 @ W1 + b1) @ W2 + b2  (dropout == identity) ----------
    ff = jnp.dot(h1, w1_ref[...], preferred_element_type=jnp.float32) + b1
    ff = jnp.maximum(ff, 0.0)
    ff = jnp.dot(ff, w2_ref[...], preferred_element_type=jnp.float32) + b2

    # --- residual + LayerNorm 2 -----------------------------------------------------
    o_ref[...] = _layernorm(h1 + ff, g2, be2)


@jax.jit
def encoder_layer(x, mask, packed):
    """x: (B, S, H) f32, mask: (B, S) f32 with 1.0 = masked key position."""
    wqkvo, w1, w2, vec_base = packed
    B, S, H = x.shape
    x2d = x.reshape(B * S, H)

    # Pre-compute the additive key mask (compare/select hoisted out of the kernel),
    # tile it over heads, and pack it into the existing small-vector slab so the
    # kernel needs no separate mask ref.
    amask = jnp.where(mask > 0.5, -1e30, 0.0).astype(jnp.float32)   # (B, S)
    amask = jnp.tile(amask, (1, NUM_HEADS))                          # (B, NH*S)
    vec = lax.dynamic_update_slice(vec_base, amask, (_R_AMASK, 0))

    out2d = pl.pallas_call(
        encoder_layer_kernel,
        out_shape=jax.ShapeDtypeStruct((B * S, H), jnp.float32),
        in_specs=[pl.BlockSpec(memory_space=pltpu.MemorySpace.VMEM)] * 5,
        out_specs=pl.BlockSpec(memory_space=pltpu.MemorySpace.VMEM),
    )(x2d, wqkvo, w1, w2, vec)

    return out2d.reshape(B, S, H)


# ----------------------------------------------------------------------------------
# Parameter construction (mirrors nn.Linear / nn.LayerNorm) and packing.
# Linear(in, out): W stored pre-transposed as (in, out), b as (1, out) => y = x @ W + b.
# ----------------------------------------------------------------------------------
def make_raw_params(key):
    def lin(k, din, dout):
        k1, k2 = jax.random.split(k)
        bound = 1.0 / (din ** 0.5)
        w = jax.random.uniform(k1, (din, dout), jnp.float32, -bound, bound)
        b = jax.random.uniform(k2, (1, dout), jnp.float32, -bound, bound)
        return w, b

    ks = jax.random.split(key, 6)
    wq, bq = lin(ks[0], HIDDEN, HIDDEN)
    wk, bk = lin(ks[1], HIDDEN, HIDDEN)
    wv, bv = lin(ks[2], HIDDEN, HIDDEN)
    wo, bo = lin(ks[3], HIDDEN, HIDDEN)
    g1 = jnp.ones((1, HIDDEN), jnp.float32)
    be1 = jnp.zeros((1, HIDDEN), jnp.float32)
    w1, b1 = lin(ks[4], HIDDEN, FF)
    w2, b2 = lin(ks[5], FF, HIDDEN)
    g2 = jnp.ones((1, HIDDEN), jnp.float32)
    be2 = jnp.zeros((1, HIDDEN), jnp.float32)
    return (wq, bq, wk, bk, wv, bv, wo, bo,
            g1, be1, w1, b1, w2, b2, g2, be2)


def pack_params(raw):
    (wq, bq, wk, bk, wv, bv, wo, bo,
     g1, be1, w1, b1, w2, b2, g2, be2) = raw
    scale = 1.0 / (HEAD_DIM ** 0.5)

    # stack the four (H, H) projection weights on a major axis (free to index in-kernel);
    # 1/sqrt(HD) folded into the Q weight and bias (host-side, done once).
    wqkvo = jnp.stack([wq * scale, wk, wv, wo], axis=0)               # (4, H, H)

    vec = jnp.zeros((VEC_ROWS, VEC_LANES), jnp.float32)
    vec = vec.at[_R_BQ, :HIDDEN].set(bq[0] * scale)
    vec = vec.at[_R_BK, :HIDDEN].set(bk[0])
    vec = vec.at[_R_BV, :HIDDEN].set(bv[0])
    vec = vec.at[_R_BO, :HIDDEN].set(bo[0])
    vec = vec.at[_R_B1, :FF].set(b1[0])
    vec = vec.at[_R_B2, :HIDDEN].set(b2[0])
    vec = vec.at[_R_G1, :HIDDEN].set(g1[0])
    vec = vec.at[_R_BE1, :HIDDEN].set(be1[0])
    vec = vec.at[_R_G2, :HIDDEN].set(g2[0])
    vec = vec.at[_R_BE2, :HIDDEN].set(be2[0])
    return (wqkvo, w1, w2, vec)


def encoder_layer_ref(x, mask, raw):
    """Pure-JAX reference matching the PyTorch EncoderLayer forward (eval mode)."""
    (wq, bq, wk, bk, wv, bv, wo, bo,
     g1, be1, w1, b1, w2, b2, g2, be2) = raw
    B, S, H = x.shape
    q, k, v = x @ wq + bq, x @ wk + bk, x @ wv + bv

    def heads(t):
        return t.reshape(B, S, NUM_HEADS, HEAD_DIM).transpose(0, 2, 1, 3)

    qh, kh, vh = heads(q), heads(k), heads(v)
    s = jnp.einsum("bhqd,bhkd->bhqk", qh, kh) / (HEAD_DIM ** 0.5)
    s = jnp.where((mask > 0.5)[:, None, None, :], -jnp.inf, s)
    p = jax.nn.softmax(s, axis=-1)
    ctx = jnp.einsum("bhqk,bhkd->bhqd", p, vh).transpose(0, 2, 1, 3).reshape(B, S, H)
    attn = ctx @ wo + bo
    h1 = _layernorm(x + attn, g1, be1)
    ff = jnp.maximum(h1 @ w1 + b1, 0.0) @ w2 + b2
    return _layernorm(h1 + ff, g2, be2)


if __name__ == "__main__":
    key = jax.random.PRNGKey(0)
    kx, kp = jax.random.split(key)

    x = jax.random.normal(kx, (BATCH, SEQ, HIDDEN), dtype=jnp.float32)
    # mask: 1.0 = key position is masked out (matches masked_fill_ semantics)
    mask = jnp.zeros((BATCH, SEQ), jnp.float32).at[:, -2:].set(1.0)

    raw = make_raw_params(kp)
    packed = pack_params(raw)

    out = jax.block_until_ready(encoder_layer(x, mask, packed))

    assert out.shape == (BATCH, SEQ, HIDDEN), out.shape
    assert bool(jnp.all(jnp.isfinite(out))), "non-finite output"

    with jax.default_matmul_precision("float32"):
        ref = encoder_layer_ref(x, mask, raw)
    assert bool(jnp.allclose(out, ref, atol=5e-2, rtol=5e-2)), \
        f"max |diff| = {float(jnp.max(jnp.abs(out - ref)))}"

    print("KERNEL_OK")
</pallas_src>

<mosaic_0001>
module attributes {stable_mosaic.version = 11 : i64} {
  func.func @encoder_layer_kernel(%arg0: memref<16x32xf32, #tpu.memory_space<vmem>>, %arg1: memref<4x32x32xf32, #tpu.memory_space<vmem>>, %arg2: memref<32x128xf32, #tpu.memory_space<vmem>>, %arg3: memref<128x32xf32, #tpu.memory_space<vmem>>, %arg4: memref<16x128xf32, #tpu.memory_space<vmem>>, %arg5: memref<16x32xf32, #tpu.memory_space<vmem>>) attributes {dimension_semantics = [], scalar_prefetch = 0 : i64, scratch_operands = 0 : i64, tpu.core_type = #tpu.core_type<tc>} {
    %c0 = arith.constant 0 : index
    %c0_0 = arith.constant 0 : index
    %0 = vector.load %arg0[%c0, %c0_0] : memref<16x32xf32, #tpu.memory_space<vmem>>, vector<16x32xf32>
    %c0_1 = arith.constant 0 : index
    %c0_2 = arith.constant 0 : index
    %1 = vector.load %arg4[%c0_1, %c0_2] : memref<16x128xf32, #tpu.memory_space<vmem>>, vector<1x32xf32>
    %c1 = arith.constant 1 : index
    %c0_3 = arith.constant 0 : index
    %2 = vector.load %arg4[%c1, %c0_3] : memref<16x128xf32, #tpu.memory_space<vmem>>, vector<1x32xf32>
    %c2 = arith.constant 2 : index
    %c0_4 = arith.constant 0 : index
    %3 = vector.load %arg4[%c2, %c0_4] : memref<16x128xf32, #tpu.memory_space<vmem>>, vector<1x32xf32>
    %c3 = arith.constant 3 : index
    %c0_5 = arith.constant 0 : index
    %4 = vector.load %arg4[%c3, %c0_5] : memref<16x128xf32, #tpu.memory_space<vmem>>, vector<1x32xf32>
    %c4 = arith.constant 4 : index
    %c0_6 = arith.constant 0 : index
    %5 = vector.load %arg4[%c4, %c0_6] : memref<16x128xf32, #tpu.memory_space<vmem>>, vector<1x128xf32>
    %c5 = arith.constant 5 : index
    %c0_7 = arith.constant 0 : index
    %6 = vector.load %arg4[%c5, %c0_7] : memref<16x128xf32, #tpu.memory_space<vmem>>, vector<1x32xf32>
    %c6 = arith.constant 6 : index
    %c0_8 = arith.constant 0 : index
    %7 = vector.load %arg4[%c6, %c0_8] : memref<16x128xf32, #tpu.memory_space<vmem>>, vector<1x32xf32>
    %c7 = arith.constant 7 : index
    %c0_9 = arith.constant 0 : index
    %8 = vector.load %arg4[%c7, %c0_9] : memref<16x128xf32, #tpu.memory_space<vmem>>, vector<1x32xf32>
    %c8 = arith.constant 8 : index
    %c0_10 = arith.constant 0 : index
    %9 = vector.load %arg4[%c8, %c0_10] : memref<16x128xf32, #tpu.memory_space<vmem>>, vector<1x32xf32>
    %c9 = arith.constant 9 : index
    %c0_11 = arith.constant 0 : index
    %10 = vector.load %arg4[%c9, %c0_11] : memref<16x128xf32, #tpu.memory_space<vmem>>, vector<1x32xf32>
    %c10 = arith.constant 10 : index
    %c0_12 = arith.constant 0 : index
    %11 = vector.load %arg4[%c10, %c0_12] : memref<16x128xf32, #tpu.memory_space<vmem>>, vector<2x32xf32>
    %c0_13 = arith.constant 0 : index
    %c0_14 = arith.constant 0 : index
    %c0_15 = arith.constant 0 : index
    %12 = vector.load %arg1[%c0_13, %c0_14, %c0_15] : memref<4x32x32xf32, #tpu.memory_space<vmem>>, vector<1x32x32xf32>
    %13 = vector.shape_cast %12 : vector<1x32x32xf32> to vector<32x32xf32>
    %cst = arith.constant dense<0.000000e+00> : vector<16x32xf32>
    %14 = tpu.matmul %0, %13, %cst {dimension_numbers = #tpu.dot_dimension_numbers<[1], [0], [0], [1], [0, 0, 1, 1], [], []>} : vector<16x32xf32>, vector<32x32xf32>, vector<16x32xf32> -> vector<16x32xf32>
    %15 = vector.broadcast %1 : vector<1x32xf32> to vector<16x32xf32>
    %16 = arith.addf %14, %15 : vector<16x32xf32>
    %c1_16 = arith.constant 1 : index
    %c0_17 = arith.constant 0 : index
    %c0_18 = arith.constant 0 : index
    %17 = vector.load %arg1[%c1_16, %c0_17, %c0_18] : memref<4x32x32xf32, #tpu.memory_space<vmem>>, vector<1x32x32xf32>
    %18 = vector.shape_cast %17 : vector<1x32x32xf32> to vector<32x32xf32>
    %cst_19 = arith.constant dense<0.000000e+00> : vector<16x32xf32>
    %19 = tpu.matmul %0, %18, %cst_19 {dimension_numbers = #tpu.dot_dimension_numbers<[1], [0], [0], [1], [0, 0, 1, 1], [], []>} : vector<16x32xf32>, vector<32x32xf32>, vector<16x32xf32> -> vector<16x32xf32>
    %20 = vector.broadcast %2 : vector<1x32xf32> to vector<16x32xf32>
    %21 = arith.addf %19, %20 : vector<16x32xf32>
    %c2_20 = arith.constant 2 : index
    %c0_21 = arith.constant 0 : index
    %c0_22 = arith.constant 0 : index
    %22 = vector.load %arg1[%c2_20, %c0_21, %c0_22] : memref<4x32x32xf32, #tpu.memory_space<vmem>>, vector<1x32x32xf32>
    %23 = vector.shape_cast %22 : vector<1x32x32xf32> to vector<32x32xf32>
    %cst_23 = arith.constant dense<0.000000e+00> : vector<16x32xf32>
    %24 = tpu.matmul %0, %23, %cst_23 {dimension_numbers = #tpu.dot_dimension_numbers<[1], [0], [0], [1], [0, 0, 1, 1], [], []>} : vector<16x32xf32>, vector<32x32xf32>, vector<16x32xf32> -> vector<16x32xf32>
    %25 = vector.broadcast %3 : vector<1x32xf32> to vector<16x32xf32>
    %26 = arith.addf %24, %25 : vector<16x32xf32>
    %27 = vector.shape_cast %16 : vector<16x32xf32> to vector<2x8x32xf32>
    %28 = vector.shape_cast %21 : vector<16x32xf32> to vector<2x8x32xf32>
    %29 = vector.shape_cast %26 : vector<16x32xf32> to vector<2x8x32xf32>
    %30 = tpu.iota {dimensions = array<i32: 0>} : vector<32x32xi32>
    %31 = tpu.iota {dimensions = array<i32: 1>} : vector<32x32xi32>
    %c3_i32 = arith.constant 3 : i32
    %32 = vector.broadcast %c3_i32 : i32 to vector<32x32xi32>
    %33 = arith.shrsi %30, %32 : vector<32x32xi32>
    %c3_i32_24 = arith.constant 3 : i32
    %34 = vector.broadcast %c3_i32_24 : i32 to vector<32x32xi32>
    %35 = arith.shrsi %31, %34 : vector<32x32xi32>
    %36 = arith.cmpi eq, %33, %35 : vector<32x32xi32>
    %cst_25 = arith.constant 1.000000e+00 : f32
    %cst_26 = arith.constant 0.000000e+00 : f32
    %37 = vector.broadcast %cst_25 : f32 to vector<32x32xf32>
    %38 = vector.broadcast %cst_26 : f32 to vector<32x32xf32>
    %39 = arith.select %36, %37, %38 : vector<32x32xi1>, vector<32x32xf32>
    %40 = tpu.iota {dimensions = array<i32: 0>} : vector<32x32xi32>
    %41 = tpu.iota {dimensions = array<i32: 1>} : vector<32x32xi32>
    %c3_i32_27 = arith.constant 3 : i32
    %42 = vector.broadcast %c3_i32_27 : i32 to vector<32x32xi32>
    %43 = arith.shrsi %40, %42 : vector<32x32xi32>
    %c3_i32_28 = arith.constant 3 : i32
    %44 = vector.broadcast %c3_i32_28 : i32 to vector<32x32xi32>
    %45 = arith.shrsi %41, %44 : vector<32x32xi32>
    %46 = arith.cmpi eq, %43, %45 : vector<32x32xi32>
    %cst_29 = arith.constant 1.000000e+00 : f32
    %cst_30 = arith.constant 0.000000e+00 : f32
    %47 = vector.broadcast %cst_29 : f32 to vector<32x32xf32>
    %48 = vector.broadcast %cst_30 : f32 to vector<32x32xf32>
    %49 = arith.select %46, %47, %48 : vector<32x32xi1>, vector<32x32xf32>
    %50 = tpu.concatenate %28, %28, %28, %28 in 1 : vector<2x8x32xf32>, vector<2x8x32xf32>, vector<2x8x32xf32>, vector<2x8x32xf32> -> vector<2x32x32xf32>
    %51 = vector.shape_cast %39 : vector<32x32xf32> to vector<1x32x32xf32>
    %52 = vector.broadcast %51 : vector<1x32x32xf32> to vector<2x32x32xf32>
    %53 = arith.mulf %50, %52 : vector<2x32x32xf32>
    %54 = tpu.concatenate %29, %29, %29, %29 in 1 : vector<2x8x32xf32>, vector<2x8x32xf32>, vector<2x8x32xf32>, vector<2x8x32xf32> -> vector<2x32x32xf32>
    %55 = vector.shape_cast %39 : vector<32x32xf32> to vector<1x32x32xf32>
    %56 = vector.broadcast %55 : vector<1x32x32xf32> to vector<2x32x32xf32>
    %57 = arith.mulf %54, %56 : vector<2x32x32xf32>
    "tpu.trace_start"() <{level = 10 : i32, message = "bqd,bmd->bqm"}> : () -> ()
    %cst_31 = arith.constant dense<0.000000e+00> : vector<2x8x32xf32>
    %58 = tpu.matmul %27, %53, %cst_31 {dimension_numbers = #tpu.dot_dimension_numbers<[2], [2], [1], [1], [0, 0, 0, 1, 1, 1], [0], [0]>} : vector<2x8x32xf32>, vector<2x32x32xf32>, vector<2x8x32xf32> -> vector<2x8x32xf32>
    "tpu.trace_stop"() : () -> ()
    %59 = vector.shape_cast %11 : vector<2x32xf32> to vector<2x1x32xf32>
    %60 = vector.broadcast %59 : vector<2x1x32xf32> to vector<2x8x32xf32>
    %61 = arith.addf %58, %60 : vector<2x8x32xf32>
    %cst_32 = arith.constant dense<0xFF800000> : vector<2x8xf32>
    %62 = vector.multi_reduction <maximumf>, %61, %cst_32 [2] : vector<2x8x32xf32> to vector<2x8xf32>
    %63 = vector.shape_cast %62 : vector<2x8xf32> to vector<2x8x1xf32>
    %64 = vector.broadcast %63 : vector<2x8x1xf32> to vector<2x8x32xf32>
    %65 = arith.subf %61, %64 : vector<2x8x32xf32>
    %66 = math.exp %65 : vector<2x8x32xf32>
    %67 = vector.shape_cast %66 : vector<2x8x32xf32> to vector<16x32xf32>
    %cst_33 = arith.constant dense<0.000000e+00> : vector<16x32xf32>
    %68 = tpu.matmul %67, %49, %cst_33 {dimension_numbers = #tpu.dot_dimension_numbers<[1], [0], [0], [1], [0, 0, 1, 1], [], []>} : vector<16x32xf32>, vector<32x32xf32>, vector<16x32xf32> -> vector<16x32xf32>
    %cst_34 = arith.constant 1.000000e-30 : f32
    %69 = vector.broadcast %cst_34 : f32 to vector<16x32xf32>
    %70 = arith.maximumf %68, %69 : vector<16x32xf32>
    %71 = tpu.reciprocal %70 {approx = true} : vector<16x32xf32> -> vector<16x32xf32>
    %72 = arith.mulf %67, %71 : vector<16x32xf32>
    %73 = vector.shape_cast %72 : vector<16x32xf32> to vector<2x8x32xf32>
    "tpu.trace_start"() <{level = 10 : i32, message = "bqm,bmc->bqc"}> : () -> ()
    %cst_35 = arith.constant dense<0.000000e+00> : vector<2x8x32xf32>
    %74 = tpu.matmul %73, %57, %cst_35 {dimension_numbers = #tpu.dot_dimension_numbers<[2], [1], [1], [2], [0, 0, 0, 1, 1, 2], [0], [0]>} : vector<2x8x32xf32>, vector<2x32x32xf32>, vector<2x8x32xf32> -> vector<2x8x32xf32>
    "tpu.trace_stop"() : () -> ()
    %75 = vector.shape_cast %74 : vector<2x8x32xf32> to vector<16x32xf32>
    %c3_36 = arith.constant 3 : index
    %c0_37 = arith.constant 0 : index
    %c0_38 = arith.constant 0 : index
    %76 = vector.load %arg1[%c3_36, %c0_37, %c0_38] : memref<4x32x32xf32, #tpu.memory_space<vmem>>, vector<1x32x32xf32>
    %77 = vector.shape_cast %76 : vector<1x32x32xf32> to vector<32x32xf32>
    %cst_39 = arith.constant dense<0.000000e+00> : vector<16x32xf32>
    %78 = tpu.matmul %75, %77, %cst_39 {dimension_numbers = #tpu.dot_dimension_numbers<[1], [0], [0], [1], [0, 0, 1, 1], [], []>} : vector<16x32xf32>, vector<32x32xf32>, vector<16x32xf32> -> vector<16x32xf32>
    %79 = vector.broadcast %4 : vector<1x32xf32> to vector<16x32xf32>
    %80 = arith.addf %78, %79 : vector<16x32xf32>
    %81 = arith.addf %0, %80 : vector<16x32xf32>
    %cst_40 = arith.constant dense<0.000000e+00> : vector<16xf32>
    %82 = vector.multi_reduction <add>, %81, %cst_40 [1] : vector<16x32xf32> to vector<16xf32>
    %83 = vector.shape_cast %82 : vector<16xf32> to vector<16x1xf32>
    %cst_41 = arith.constant 3.200000e+01 : f32
    %84 = vector.broadcast %cst_41 : f32 to vector<16x1xf32>
    %85 = arith.divf %83, %84 : vector<16x1xf32>
    %86 = vector.broadcast %85 : vector<16x1xf32> to vector<16x32xf32>
    %87 = arith.subf %81, %86 : vector<16x32xf32>
    %88 = arith.mulf %87, %87 : vector<16x32xf32>
    %cst_42 = arith.constant dense<0.000000e+00> : vector<16xf32>
    %89 = vector.multi_reduction <add>, %88, %cst_42 [1] : vector<16x32xf32> to vector<16xf32>
    %90 = vector.shape_cast %89 : vector<16xf32> to vector<16x1xf32>
    %cst_43 = arith.constant 3.200000e+01 : f32
    %91 = vector.broadcast %cst_43 : f32 to vector<16x1xf32>
    %92 = arith.divf %90, %91 : vector<16x1xf32>
    %cst_44 = arith.constant 9.99999974E-6 : f32
    %93 = vector.broadcast %cst_44 : f32 to vector<16x1xf32>
    %94 = arith.addf %92, %93 : vector<16x1xf32>
    %95 = math.rsqrt %94 : vector<16x1xf32>
    %96 = vector.broadcast %95 : vector<16x1xf32> to vector<16x32xf32>
    %97 = arith.mulf %87, %96 : vector<16x32xf32>
    %98 = vector.broadcast %7 : vector<1x32xf32> to vector<16x32xf32>
    %99 = arith.mulf %97, %98 : vector<16x32xf32>
    %100 = vector.broadcast %8 : vector<1x32xf32> to vector<16x32xf32>
    %101 = arith.addf %99, %100 : vector<16x32xf32>
    %c0_45 = arith.constant 0 : index
    %c0_46 = arith.constant 0 : index
    %102 = vector.load %arg2[%c0_45, %c0_46] : memref<32x128xf32, #tpu.memory_space<vmem>>, vector<32x128xf32>
    %cst_47 = arith.constant dense<0.000000e+00> : vector<16x128xf32>
    %103 = tpu.matmul %101, %102, %cst_47 {dimension_numbers = #tpu.dot_dimension_numbers<[1], [0], [0], [1], [0, 0, 1, 1], [], []>} : vector<16x32xf32>, vector<32x128xf32>, vector<16x128xf32> -> vector<16x128xf32>
    %104 = vector.broadcast %5 : vector<1x128xf32> to vector<16x128xf32>
    %105 = arith.addf %103, %104 : vector<16x128xf32>
    %cst_48 = arith.constant 0.000000e+00 : f32
    %106 = vector.broadcast %cst_48 : f32 to vector<16x128xf32>
    %107 = arith.maximumf %105, %106 : vector<16x128xf32>
    %c0_49 = arith.constant 0 : index
    %c0_50 = arith.constant 0 : index
    %108 = vector.load %arg3[%c0_49, %c0_50] : memref<128x32xf32, #tpu.memory_space<vmem>>, vector<128x32xf32>
    %cst_51 = arith.constant dense<0.000000e+00> : vector<16x32xf32>
    %109 = tpu.matmul %107, %108, %cst_51 {dimension_numbers = #tpu.dot_dimension_numbers<[1], [0], [0], [1], [0, 0, 1, 1], [], []>} : vector<16x128xf32>, vector<128x32xf32>, vector<16x32xf32> -> vector<16x32xf32>
    %110 = vector.broadcast %6 : vector<1x32xf32> to vector<16x32xf32>
    %111 = arith.addf %109, %110 : vector<16x32xf32>
    %112 = arith.addf %101, %111 : vector<16x32xf32>
    %cst_52 = arith.constant dense<0.000000e+00> : vector<16xf32>
    %113 = vector.multi_reduction <add>, %112, %cst_52 [1] : vector<16x32xf32> to vector<16xf32>
    %114 = vector.shape_cast %113 : vector<16xf32> to vector<16x1xf32>
    %cst_53 = arith.constant 3.200000e+01 : f32
    %115 = vector.broadcast %cst_53 : f32 to vector<16x1xf32>
    %116 = arith.divf %114, %115 : vector<16x1xf32>
    %117 = vector.broadcast %116 : vector<16x1xf32> to vector<16x32xf32>
    %118 = arith.subf %112, %117 : vector<16x32xf32>
    %119 = arith.mulf %118, %118 : vector<16x32xf32>
    %cst_54 = arith.constant dense<0.000000e+00> : vector<16xf32>
    %120 = vector.multi_reduction <add>, %119, %cst_54 [1] : vector<16x32xf32> to vector<16xf32>
    %121 = vector.shape_cast %120 : vector<16xf32> to vector<16x1xf32>
    %cst_55 = arith.constant 3.200000e+01 : f32
    %122 = vector.broadcast %cst_55 : f32 to vector<16x1xf32>
    %123 = arith.divf %121, %122 : vector<16x1xf32>
    %cst_56 = arith.constant 9.99999974E-6 : f32
    %124 = vector.broadcast %cst_56 : f32 to vector<16x1xf32>
    %125 = arith.addf %123, %124 : vector<16x1xf32>
    %126 = math.rsqrt %125 : vector<16x1xf32>
    %127 = vector.broadcast %126 : vector<16x1xf32> to vector<16x32xf32>
    %128 = arith.mulf %118, %127 : vector<16x32xf32>
    %129 = vector.broadcast %9 : vector<1x32xf32> to vector<16x32xf32>
    %130 = arith.mulf %128, %129 : vector<16x32xf32>
    %131 = vector.broadcast %10 : vector<1x32xf32> to vector<16x32xf32>
    %132 = arith.addf %130, %131 : vector<16x32xf32>
    %c0_57 = arith.constant 0 : index
    %c0_58 = arith.constant 0 : index
    %133 = vector.load %arg5[%c0_57, %c0_58] : memref<16x32xf32, #tpu.memory_space<vmem>>, vector<16x32xf32>
    tpu.vector_store %arg5[%c0_57, %c0_58], %132 {strides = array<i32>} : memref<16x32xf32, #tpu.memory_space<vmem>>, vector<16x32xf32>,
    return
  }
}

</mosaic_0001>

<llo_original>
// kernel: tile.9
$region0: #{tile.9}
  %s0 = inlined_call_operand.vmem [shape: f32[2,4,8], index: 0, kind: input, shape index: {}]
  %s1 = inlined_call_operand.vmem [shape: f32[2,32], index: 1, kind: output, shape index: {}]
  $region1: #{tile.9} parent=0
    #allocation0 [shape = 'u8[4096]{0}', space=vmem, size = 0x1000, scoped, tag = 'scoped mem for output reshape']
    #allocation1 [shape = 'u8[8192]{0}', space=vmem, size = 0x2000, scoped, tag = 'scoped mem for input reshape']
    %s3 = sshllo.u32 0, 4
    %s4 = scalar_lea.vmem %s0, 4
    %v5 = vld [vmem:[%s4] sm:%s3]
    %s6 = scalar_lea.vmem [#allocation1], 8
    %7 = vst [vmem:[%s6] sm:%s3] %v5
    %v8 = vld [vmem:[%s0] sm:%s3]
    %9 = vst [vmem:[#allocation1] sm:%s3] %v8
    %s10 = smov 3
    %v11 = vld [vmem:[#allocation1] ss:$8 sm:%s10]
    %vm12 = vcmask 64512
    %13 = vst.msk [vmem:[#allocation0] sm:$0x3] %vm12, %v11
    %s14 = scalar_lea.vmem [#allocation1], 3
    %s15 = smov 3
    %v16 = vld [vmem:[%s14] ss:$8 sm:%s15]
    %17 = vrot.lane.b32.xlu0 %v16, 24
    %v18 = vpop.permute.xlu0 %17
    %vm19 = vcmask 261312
    %20 = vst.msk [vmem:[#allocation0] sm:$0x3] %vm19, %v18
    %s21 = scalar_lea.vmem [#allocation1], 2
    %s22 = smov 3
    %v23 = vld [vmem:[%s21] ss:$8 sm:%s22]
    %24 = vrot.lane.b32.xlu0 %v23, 16
    %v25 = vpop.permute.xlu0 %24
    %vm26 = vcmask 195712
    %27 = vst.msk [vmem:[#allocation0] sm:$0x3] %vm26, %v25
    %s28 = scalar_lea.vmem [#allocation1], 1
    %s29 = smov 3
    %v30 = vld [vmem:[%s28] ss:$8 sm:%s29]
    %31 = vrot.lane.b32.xlu0 %v30, 8
    %v32 = vpop.permute.xlu0 %31
    %vm33 = vcmask 130112
    %34 = vst.msk [vmem:[#allocation0] sm:$0x3] %vm33, %v32
    %s36 = sshllo.u32 0, 2
    %v38 = vld [vmem:[#allocation0] sm:%s36]
    %s39 = sshllo.u32 0, 2
    %40 = vst [vmem:[%s1] sm:%s39] %v38

// kernel: encoder_layer.1
$region0: #{encoder_layer.1}
  #allocation0 [shape = 'u32[]', space=smem, size = 0x4, offset = 0x4, fixed_abs, tag = 'smem constant byte address 0x4 - core index']
  #allocation1 [shape = 'u32[144,128]{1,0:T(1,128)}', space=vmem, size = 0x12000, scoped, tag = 'internal scratch']
  %s0 = inlined_call_operand.vmem [shape: f32[16,32], index: 0, kind: input, shape index: {}]
  %s1 = inlined_call_operand.vmem [shape: f32[4,32,32], index: 1, kind: input, shape index: {}]
  %s2 = inlined_call_operand.vmem [shape: f32[32,128], index: 2, kind: input, shape index: {}]
  %s3 = inlined_call_operand.vmem [shape: f32[128,32], index: 3, kind: input, shape index: {}]
  %s4 = inlined_call_operand.vmem [shape: f32[16,128], index: 4, kind: input, shape index: {}]
  %s5 = inlined_call_operand.hbm [shape: f32[16,32], index: 5, kind: output, shape index: {}]
  %s6 = sld [smem:[#allocation0]]
  $region30: #{encoder_layer.1} parent=0
    _
  %s8 = ssub.s32 1, %s6
  %s9 = scalar_select 0, %s8, %s6
  $region1: #{encoder_layer.1} parent=0
    #allocation2 [shape = 'u8[8192]{0}', space=vmem, size = 0x2000, scoped, tag = 'output window, operand 0, single buffered']
    #allocation3 [shape = 's32[1]{0}', space=sflag, size = 0x4, scoped, tag = 'scoped memory for encoder_layer.1']
    %10 = vsyncpa [#allocation3], 0
    // Predicated region
    $region2: #{encoder_layer.1} parent=1 // pred_check
      _
    $region3: #{encoder_layer.1} parent=1 // pred_check_branch
      %12 = sbr.rel (0) target = $region5
    $region4: #{encoder_layer.1} parent=1 // pred_region
      _
    $region5: #{encoder_layer.1} parent=1 // pred_fallthru
      _
    // Predicated region
    $region6: #{encoder_layer.1} parent=1 // pred_check
      _
    $region7: #{encoder_layer.1} parent=1 // pred_check_branch
      %14 = sbr.rel (0) target = $region9
    $region8: #{encoder_layer.1} parent=1 // pred_region
      _
    $region9: #{encoder_layer.1} parent=1 // pred_fallthru
      _
    // Predicated region
    $region10: #{encoder_layer.1} parent=1 // pred_check
      _
    $region11: #{encoder_layer.1} parent=1 // pred_check_branch
      %16 = sbr.rel (0) target = $region13
    $region12: #{encoder_layer.1} parent=1 // pred_region
      _
    $region13: #{encoder_layer.1} parent=1 // pred_fallthru
      _
    // Predicated region
    $region14: #{encoder_layer.1} parent=1 // pred_check
      _
    $region15: #{encoder_layer.1} parent=1 // pred_check_branch
      %18 = sbr.rel (0) target = $region17
    $region16: #{encoder_layer.1} parent=1 // pred_region
      _
    $region17: #{encoder_layer.1} parent=1 // pred_fallthru
      _
    // Predicated region
    $region18: #{encoder_layer.1} parent=1 // pred_check
      _
    $region19: #{encoder_layer.1} parent=1 // pred_check_branch
      %20 = sbr.rel (0) target = $region21
    $region20: #{encoder_layer.1} parent=1 // pred_region
      _
    $region21: #{encoder_layer.1} parent=1 // pred_fallthru
      _
    %v21 = vld [vmem:[%s0] sm:$0xff]
    %v22 = vld [vmem:[%s0 + $0x8] sm:$0xff]
    %v23 = vld [vmem:[%s4] sm:$0x1]
    %v24 = vld [vmem:[%s4 + $0x1] sm:$0x1]
    %v25 = vld [vmem:[%s4 + $0x2] sm:$0x1]
    %v26 = vld [vmem:[%s4 + $0x3] sm:$0x1]
    %v27 = vld [vmem:[%s4 + $0x4] sm:$0x1]
    %v28 = vld [vmem:[%s4 + $0x5] sm:$0x1]
    %v29 = vld [vmem:[%s4 + $0x6] sm:$0x1]
    %v30 = vld [vmem:[%s4 + $0x7] sm:$0x1]
    %v31 = vld [vmem:[%s4 + $0x8] sm:$0x1]
    %v32 = vld [vmem:[%s4 + $0x9] sm:$0x1]
    %v33 = vld [vmem:[%s4 + $0xa] sm:$0x3]
    %v34 = vld [vmem:[%s1] sm:$0xff]
    %v35 = vld [vmem:[%s1 + $0x8] sm:$0xff]
    %v36 = vld [vmem:[%s1 + $0x10] sm:$0xff]
    %v37 = vld [vmem:[%s1 + $0x18] sm:$0xff]
    %v38 = vlaneseq
    %v39 = vshrl.u32 %v38, 7
    %v40 = vsub.s32 0, %v39
    %v41 = vrot.slane %v23, %v40
    %vm42 = vcmask 261120
    %v44 = vsel %vm42, %v21, 0
    %v47 = vsel %vm42, %v22, 0
    %49 = vmatprep.subr.mxu0 0.0
    %50 = vmatpush1.msra.mxu0 %v34
    %51 = vmatprep.subr.mxu0 0.0
    %52 = vmatpush1.msra.mxu0 %v35
    %53 = vmatprep.subr.mxu0 0.0
    %54 = vmatpush1.msra.mxu0 %v36
    %55 = vmatprep.subr.mxu0 0.0
    %56 = vmatpush1.msra.mxu0 %v37
    %57 = vmatprep.subr.mxu0 0.0
    %58 = vmatpush1.msra.mxu0 0.0
    %59 = vmatprep.subr.mxu0 0.0
    %60 = vmatpush1.msra.mxu0 0.0
    %61 = vmatprep.subr.mxu0 0.0
    %62 = vmatpush1.msra.mxu0 0.0
    %63 = vmatprep.subr.mxu0 0.0
    %64 = vmatpush1.msra.mxu0 0.0
    %65 = vmatprep.subr.mxu0 0.0
    %66 = vmatpush1.msra.mxu0 0.0
    %67 = vmatprep.subr.mxu0 0.0
    %68 = vmatpush1.msra.mxu0 0.0
    %69 = vmatprep.subr.mxu0 0.0
    %70 = vmatpush1.msra.mxu0 0.0
    %71 = vmatprep.subr.mxu0 0.0
    %72 = vmatpush1.msra.mxu0 0.0
    %73 = vmatprep.subr.mxu0 0.0
    %74 = vmatpush1.msra.mxu0 0.0
    %75 = vmatprep.subr.mxu0 0.0
    %76 = vmatpush1.msra.mxu0 0.0
    %77 = vmatprep.subr.mxu0 0.0
    %78 = vmatpush1.msra.mxu0 0.0
    %79 = vmatprep.subr.mxu0 0.0
    %80 = vmatpush1.msra.mxu0 0.0
    %81 = vmatprep.subr.mxu0 0.0
    %82 = vmatpush1.msra.mxu0 0.0
    %83 = vmatprep.subr.mxu0 0.0
    %84 = vmatpush1.msra.mxu0 0.0
    %85 = vmatprep.subr.mxu0 0.0
    %86 = vmatpush1.msra.mxu0 0.0
    %87 = vmatprep.subr.mxu0 0.0
    %88 = vmatpush1.msra.mxu0 0.0
    %89 = vmatprep.subr.mxu0 0.0
    %90 = vmatpush1.msra.mxu0 0.0
    %91 = vmatprep.subr.mxu0 0.0
    %92 = vmatpush1.msra.mxu0 0.0
    %93 = vmatprep.subr.mxu0 0.0
    %94 = vmatpush1.msra.mxu0 0.0
    %95 = vmatprep.subr.mxu0 0.0
    %96 = vmatpush1.msra.mxu0 0.0
    %97 = vmatprep.subr.mxu0 0.0
    %98 = vmatpush1.msra.mxu0 0.0
    %99 = vmatprep.subr.mxu0 0.0
    %100 = vmatpush1.msra.mxu0 0.0
    %101 = vmatprep.subr.mxu0 0.0
    %102 = vmatpush1.msra.mxu0 0.0
    %103 = vmatprep.subr.mxu0 0.0
    %104 = vmatpush1.msra.mxu0 0.0
    %105 = vmatprep.subr.mxu0 0.0
    %106 = vmatpush1.msra.mxu0 0.0
    %107 = vmatprep.subr.mxu0 0.0
    %108 = vmatpush1.msra.mxu0 0.0
    %109 = vmatprep.subr.mxu0 0.0
    %110 = vmatpush1.msra.mxu0 0.0
    %111 = vmatprep.subr.mxu0 0.0
    %112 = vmatpush1.msra.mxu0 0.0
    %113 = vmatprep.mubr.f32.mxu0 0.0
    %114 = vmatmul.mubr.f32.gmra.mrb[0].mxu0 %v44
    %v115 = vpop.f32.mrb[0].mxu0
    %v116 = vadd.f32 %v41, %v115
    %v117 = vpop.f32.mrb[0].mxu0
    %118 = vmatprep.mubr.f32.mxu0 0.0
    %119 = vmatmul.mubr.f32.gmra.mrb[0].mxu0 %v47
    %v120 = vpop.f32.mrb[0].mxu0
    %v121 = vadd.f32 %v41, %v120
    %v122 = vpop.f32.mrb[0].mxu0
    %123 = vdwg.mxu0
    %s124 = scalar_lea.vmem %s1, 32
    %v125 = vld [vmem:[%s124] sm:$0xff]
    %v126 = vld [vmem:[%s124 + $0x8] sm:$0xff]
    %v127 = vld [vmem:[%s124 + $0x10] sm:$0xff]
    %v128 = vld [vmem:[%s124 + $0x18] sm:$0xff]
    %v129 = vlaneseq
    %v130 = vshrl.u32 %v129, 7
    %v131 = vsub.s32 0, %v130
    %v132 = vrot.slane %v24, %v131
    %133 = vmatprep.subr.mxu0 0.0
    %134 = vmatpush1.msra.mxu0 %v125
    %135 = vmatprep.subr.mxu0 0.0
    %136 = vmatpush1.msra.mxu0 %v126
    %137 = vmatprep.subr.mxu0 0.0
    %138 = vmatpush1.msra.mxu0 %v127
    %139 = vmatprep.subr.mxu0 0.0
    %140 = vmatpush1.msra.mxu0 %v128
    %141 = vmatprep.subr.mxu0 0.0
    %142 = vmatpush1.msra.mxu0 0.0
    %143 = vmatprep.subr.mxu0 0.0
    %144 = vmatpush1.msra.mxu0 0.0
    %145 = vmatprep.subr.mxu0 0.0
    %146 = vmatpush1.msra.mxu0 0.0
    %147 = vmatprep.subr.mxu0 0.0
    %148 = vmatpush1.msra.mxu0 0.0
    %149 = vmatprep.subr.mxu0 0.0
    %150 = vmatpush1.msra.mxu0 0.0
    %151 = vmatprep.subr.mxu0 0.0
    %152 = vmatpush1.msra.mxu0 0.0
    %153 = vmatprep.subr.mxu0 0.0
    %154 = vmatpush1.msra.mxu0 0.0
    %155 = vmatprep.subr.mxu0 0.0
    %156 = vmatpush1.msra.mxu0 0.0
    %157 = vmatprep.subr.mxu0 0.0
    %158 = vmatpush1.msra.mxu0 0.0
    %159 = vmatprep.subr.mxu0 0.0
    %160 = vmatpush1.msra.mxu0 0.0
    %161 = vmatprep.subr.mxu0 0.0
    %162 = vmatpush1.msra.mxu0 0.0
    %163 = vmatprep.subr.mxu0 0.0
    %164 = vmatpush1.msra.mxu0 0.0
    %165 = vmatprep.subr.mxu0 0.0
    %166 = vmatpush1.msra.mxu0 0.0
    %167 = vmatprep.subr.mxu0 0.0
    %168 = vmatpush1.msra.mxu0 0.0
    %169 = vmatprep.subr.mxu0 0.0
    %170 = vmatpush1.msra.mxu0 0.0
    %171 = vmatprep.subr.mxu0 0.0
    %172 = vmatpush1.msra.mxu0 0.0
    %173 = vmatprep.subr.mxu0 0.0
    %174 = vmatpush1.msra.mxu0 0.0
    %175 = vmatprep.subr.mxu0 0.0
    %176 = vmatpush1.msra.mxu0 0.0
    %177 = vmatprep.subr.mxu0 0.0
    %178 = vmatpush1.msra.mxu0 0.0
    %179 = vmatprep.subr.mxu0 0.0
    %180 = vmatpush1.msra.mxu0 0.0
    %181 = vmatprep.subr.mxu0 0.0
    %182 = vmatpush1.msra.mxu0 0.0
    %183 = vmatprep.subr.mxu0 0.0
    %184 = vmatpush1.msra.mxu0 0.0
    %185 = vmatprep.subr.mxu0 0.0
    %186 = vmatpush1.msra.mxu0 0.0
    %187 = vmatprep.subr.mxu0 0.0
    %188 = vmatpush1.msra.mxu0 0.0
    %189 = vmatprep.subr.mxu0 0.0
    %190 = vmatpush1.msra.mxu0 0.0
    %191 = vmatprep.subr.mxu0 0.0
    %192 = vmatpush1.msra.mxu0 0.0
    %193 = vmatprep.subr.mxu0 0.0
    %194 = vmatpush1.msra.mxu0 0.0
    %195 = vmatprep.subr.mxu0 0.0
    %196 = vmatpush1.msra.mxu0 0.0
    %197 = vmatprep.mubr.f32.mxu0 0.0
    %198 = vmatmul.mubr.f32.gmra.mrb[0].mxu0 %v44
    %v199 = vpop.f32.mrb[0].mxu0
    %v200 = vadd.f32 %v132, %v199
    %v201 = vpop.f32.mrb[0].mxu0
    %202 = vmatprep.mubr.f32.mxu0 0.0
    %203 = vmatmul.mubr.f32.gmra.mrb[0].mxu0 %v47
    %v204 = vpop.f32.mrb[0].mxu0
    %v205 = vadd.f32 %v132, %v204
    %v206 = vpop.f32.mrb[0].mxu0
    %207 = vdwg.mxu0
    %s208 = scalar_lea.vmem %s1, 64
    %v209 = vld [vmem:[%s208] sm:$0xff]
    %v210 = vld [vmem:[%s208 + $0x8] sm:$0xff]
    %v211 = vld [vmem:[%s208 + $0x10] sm:$0xff]
    %v212 = vld [vmem:[%s208 + $0x18] sm:$0xff]
    %v213 = vlaneseq
    %v214 = vshrl.u32 %v213, 7
    %v215 = vsub.s32 0, %v214
    %v216 = vrot.slane %v25, %v215
    %217 = vmatprep.subr.mxu0 0.0
    %218 = vmatpush1.msra.mxu0 %v209
    %219 = vmatprep.subr.mxu0 0.0
    %220 = vmatpush1.msra.mxu0 %v210
    %221 = vmatprep.subr.mxu0 0.0
    %222 = vmatpush1.msra.mxu0 %v211
    %223 = vmatprep.subr.mxu0 0.0
    %224 = vmatpush1.msra.mxu0 %v212
    %225 = vmatprep.subr.mxu0 0.0
    %226 = vmatpush1.msra.mxu0 0.0
    %227 = vmatprep.subr.mxu0 0.0
    %228 = vmatpush1.msra.mxu0 0.0
    %229 = vmatprep.subr.mxu0 0.0
    %230 = vmatpush1.msra.mxu0 0.0
    %231 = vmatprep.subr.mxu0 0.0
    %232 = vmatpush1.msra.mxu0 0.0
    %233 = vmatprep.subr.mxu0 0.0
    %234 = vmatpush1.msra.mxu0 0.0
    %235 = vmatprep.subr.mxu0 0.0
    %236 = vmatpush1.msra.mxu0 0.0
    %237 = vmatprep.subr.mxu0 0.0
    %238 = vmatpush1.msra.mxu0 0.0
    %239 = vmatprep.subr.mxu0 0.0
    %240 = vmatpush1.msra.mxu0 0.0
    %241 = vmatprep.subr.mxu0 0.0
    %242 = vmatpush1.msra.mxu0 0.0
    %243 = vmatprep.subr.mxu0 0.0
    %244 = vmatpush1.msra.mxu0 0.0
    %245 = vmatprep.subr.mxu0 0.0
    %246 = vmatpush1.msra.mxu0 0.0
    %247 = vmatprep.subr.mxu0 0.0
    %248 = vmatpush1.msra.mxu0 0.0
    %249 = vmatprep.subr.mxu0 0.0
    %250 = vmatpush1.msra.mxu0 0.0
    %251 = vmatprep.subr.mxu0 0.0
    %252 = vmatpush1.msra.mxu0 0.0
    %253 = vmatprep.subr.mxu0 0.0
    %254 = vmatpush1.msra.mxu0 0.0
    %255 = vmatprep.subr.mxu0 0.0
    %256 = vmatpush1.msra.mxu0 0.0
    %257 = vmatprep.subr.mxu0 0.0
    %258 = vmatpush1.msra.mxu0 0.0
    %259 = vmatprep.subr.mxu0 0.0
    %260 = vmatpush1.msra.mxu0 0.0
    %261 = vmatprep.subr.mxu0 0.0
    %262 = vmatpush1.msra.mxu0 0.0
    %263 = vmatprep.subr.mxu0 0.0
    %264 = vmatpush1.msra.mxu0 0.0
    %265 = vmatprep.subr.mxu0 0.0
    %266 = vmatpush1.msra.mxu0 0.0
    %267 = vmatprep.subr.mxu0 0.0
    %268 = vmatpush1.msra.mxu0 0.0
    %269 = vmatprep.subr.mxu0 0.0
    %270 = vmatpush1.msra.mxu0 0.0
    %271 = vmatprep.subr.mxu0 0.0
    %272 = vmatpush1.msra.mxu0 0.0
    %273 = vmatprep.subr.mxu0 0.0
    %274 = vmatpush1.msra.mxu0 0.0
    %275 = vmatprep.subr.mxu0 0.0
    %276 = vmatpush1.msra.mxu0 0.0
    %277 = vmatprep.subr.mxu0 0.0
    %278 = vmatpush1.msra.mxu0 0.0
    %279 = vmatprep.subr.mxu0 0.0
    %280 = vmatpush1.msra.mxu0 0.0
    %281 = vmatprep.mubr.f32.mxu0 0.0
    %282 = vmatmul.mubr.f32.gmra.mrb[0].mxu0 %v44
    %v283 = vpop.f32.mrb[0].mxu0
    %v284 = vadd.f32 %v216, %v283
    %v285 = vpop.f32.mrb[0].mxu0
    %286 = vmatprep.mubr.f32.mxu0 0.0
    %287 = vmatmul.mubr.f32.gmra.mrb[0].mxu0 %v47
    %v288 = vpop.f32.mrb[0].mxu0
    %v289 = vadd.f32 %v216, %v288
    %v290 = vpop.f32.mrb[0].mxu0
    %291 = vdwg.mxu0
    %v292 = vlaneseq
    %v293 = vshrl.u32 %v292, 7
    %v294 = vadd.s32 %v293, 8
    %v295 = vadd.s32 %v293, 16
    %v296 = vadd.s32 %v293, 24
    %v297 = vlaneseq
    %v298 = vand.u32 %v297, 127
    %v299 = vshra.s32 %v293, 3
    %v300 = vshra.s32 %v294, 3
    %v301 = vshra.s32 %v295, 3
    %v302 = vshra.s32 %v296, 3
    %v303 = vshra.s32 %v298, 3
    %vm304 = vcmp.eq.s32.totalorder %v299, %v303
    %vm305 = vcmp.eq.s32.totalorder %v300, %v303
    %vm306 = vcmp.eq.s32.totalorder %v301, %v303
    %vm307 = vcmp.eq.s32.totalorder %v302, %v303
    %v308 = vsel %vm304, 1.0, 0.0
    %v309 = vsel %vm305, 1.0, 0.0
    %v310 = vsel %vm306, 1.0, 0.0
    %v311 = vsel %vm307, 1.0, 0.0
    %v312 = vmul.f32 %v200, %v308
    %v313 = vmul.f32 %v200, %v309
    %v314 = vmul.f32 %v200, %v310
    %v315 = vmul.f32 %v200, %v311
    %v316 = vmul.f32 %v205, %v308
    %v317 = vmul.f32 %v205, %v309
    %v318 = vmul.f32 %v205, %v310
    %v319 = vmul.f32 %v205, %v311
    %v320 = vmul.f32 %v284, %v308
    %v321 = vmul.f32 %v284, %v309
    %v322 = vmul.f32 %v284, %v310
    %v323 = vmul.f32 %v284, %v311
    %v324 = vmul.f32 %v289, %v308
    %v325 = vmul.f32 %v289, %v309
    %v326 = vmul.f32 %v289, %v310
    %v327 = vmul.f32 %v289, %v311
    %v330 = vunpack.c.l.s4 1966171168
    %v331 = vunpack.c.0.s8 %v330
    %v332 = vlaneseq
    %v333 = vshrl.u32 %v332, 7
    %v334 = vsub.s32 %v331, %v333
    %v335 = vrot.slane %v33, %v334
    %v336 = vcombine.high %v335, %v335
    %v338 = vunpack.c.l.s4 1966171168
    %v339 = vunpack.c.0.s8 %v338
    %v340 = vlaneseq
    %v341 = vshrl.u32 %v340, 7
    %v342 = vsub.s32 %v339, %v341
    %v343 = vrot.slane %v335, %v342
    %v345 = vunpack.c.l.s4 1966171168
    %v346 = vunpack.c.0.s8 %v345
    %v347 = vlaneseq
    %v348 = vshrl.u32 %v347, 7
    %v349 = vsub.s32 %v346, %v348
    %v350 = vrot.slane %v336, %v349
    %v351 = vlaneseq
    %v352 = vshrl.u32 %v351, 7
    %v353 = vsub.s32 0, %v352
    %v354 = vrot.slane %v343, %v353
    %v355 = vlaneseq
    %v356 = vshrl.u32 %v355, 7
    %v357 = vsub.s32 0, %v356
    %v358 = vrot.slane %v350, %v357
    %v362 = vsel %vm42, %v116, 0
    %v365 = vsel %vm42, %v312, 0
    %v368 = vsel %vm42, %v313, 0
    %v371 = vsel %vm42, %v314, 0
    %v374 = vsel %vm42, %v315, 0
    %376 = vmatprep.subr.mxu0 0.0
    %377 = vmatpush1.xpose.msra.mxu0 %v365
    %378 = vmatprep.subr.mxu0 0.0
    %379 = vmatpush1.xpose.msra.mxu0 %v368
    %380 = vmatprep.subr.mxu0 0.0
    %381 = vmatpush1.xpose.msra.mxu0 %v371
    %382 = vmatprep.subr.mxu0 0.0
    %383 = vmatpush1.xpose.msra.mxu0 %v374
    %384 = vmatprep.subr.mxu0 0.0
    %385 = vmatpush1.xpose.msra.mxu0 0.0
    %386 = vmatprep.subr.mxu0 0.0
    %387 = vmatpush1.xpose.msra.mxu0 0.0
    %388 = vmatprep.subr.mxu0 0.0
    %389 = vmatpush1.xpose.msra.mxu0 0.0
    %390 = vmatprep.subr.mxu0 0.0
    %391 = vmatpush1.xpose.msra.mxu0 0.0
    %392 = vmatprep.subr.mxu0 0.0
    %393 = vmatpush1.xpose.msra.mxu0 0.0
    %394 = vmatprep.subr.mxu0 0.0
    %395 = vmatpush1.xpose.msra.mxu0 0.0
    %396 = vmatprep.subr.mxu0 0.0
    %397 = vmatpush1.xpose.msra.mxu0 0.0
    %398 = vmatprep.subr.mxu0 0.0
    %399 = vmatpush1.xpose.msra.mxu0 0.0
    %400 = vmatprep.subr.mxu0 0.0
    %401 = vmatpush1.xpose.msra.mxu0 0.0
    %402 = vmatprep.subr.mxu0 0.0
    %403 = vmatpush1.xpose.msra.mxu0 0.0
    %404 = vmatprep.subr.mxu0 0.0
    %405 = vmatpush1.xpose.msra.mxu0 0.0
    %406 = vmatprep.subr.mxu0 0.0
    %407 = vmatpush1.xpose.msra.mxu0 0.0
    %408 = vmatprep.subr.mxu0 0.0
    %409 = vmatpush1.xpose.msra.mxu0 0.0
    %410 = vmatprep.subr.mxu0 0.0
    %411 = vmatpush1.xpose.msra.mxu0 0.0
    %412 = vmatprep.subr.mxu0 0.0
    %413 = vmatpush1.xpose.msra.mxu0 0.0
    %414 = vmatprep.subr.mxu0 0.0
    %415 = vmatpush1.xpose.msra.mxu0 0.0
    %416 = vmatprep.subr.mxu0 0.0
    %417 = vmatpush1.xpose.msra.mxu0 0.0
    %418 = vmatprep.subr.mxu0 0.0
    %419 = vmatpush1.xpose.msra.mxu0 0.0
    %420 = vmatprep.subr.mxu0 0.0
    %421 = vmatpush1.xpose.msra.mxu0 0.0
    %422 = vmatprep.subr.mxu0 0.0
    %423 = vmatpush1.xpose.msra.mxu0 0.0
    %424 = vmatprep.subr.mxu0 0.0
    %425 = vmatpush1.xpose.msra.mxu0 0.0
    %426 = vmatprep.subr.mxu0 0.0
    %427 = vmatpush1.xpose.msra.mxu0 0.0
    %428 = vmatprep.subr.mxu0 0.0
    %429 = vmatpush1.xpose.msra.mxu0 0.0
    %430 = vmatprep.subr.mxu0 0.0
    %431 = vmatpush1.xpose.msra.mxu0 0.0
    %432 = vmatprep.subr.mxu0 0.0
    %433 = vmatpush1.xpose.msra.mxu0 0.0
    %434 = vmatprep.subr.mxu0 0.0
    %435 = vmatpush1.xpose.msra.mxu0 0.0
    %436 = vmatprep.subr.mxu0 0.0
    %437 = vmatpush1.xpose.msra.mxu0 0.0
    %438 = vmatprep.subr.mxu0 0.0
    %439 = vmatpush1.xpose.msra.mxu0 0.0
    %440 = vmatprep.mubr.f32.mxu0 0.0
    %441 = vmatmul.mubr.f32.gmra.mrb[0].mxu0 %v362
    %v442 = vpop.f32.mrb[0].mxu0
    %v443 = vadd.f32 %v354, %v442
    %v444 = vpop.f32.mrb[0].mxu0
    %445 = vdwg.mxu0
    %v447 = vsel %vm42, %v121, 0
    %v450 = vsel %vm42, %v316, 0
    %v453 = vsel %vm42, %v317, 0
    %v456 = vsel %vm42, %v318, 0
    %v459 = vsel %vm42, %v319, 0
    %461 = vmatprep.subr.mxu0 0.0
    %462 = vmatpush1.xpose.msra.mxu0 %v450
    %463 = vmatprep.subr.mxu0 0.0
    %464 = vmatpush1.xpose.msra.mxu0 %v453
    %465 = vmatprep.subr.mxu0 0.0
    %466 = vmatpush1.xpose.msra.mxu0 %v456
    %467 = vmatprep.subr.mxu0 0.0
    %468 = vmatpush1.xpose.msra.mxu0 %v459
    %469 = vmatprep.subr.mxu0 0.0
    %470 = vmatpush1.xpose.msra.mxu0 0.0
    %471 = vmatprep.subr.mxu0 0.0
    %472 = vmatpush1.xpose.msra.mxu0 0.0
    %473 = vmatprep.subr.mxu0 0.0
    %474 = vmatpush1.xpose.msra.mxu0 0.0
    %475 = vmatprep.subr.mxu0 0.0
    %476 = vmatpush1.xpose.msra.mxu0 0.0
    %477 = vmatprep.subr.mxu0 0.0
    %478 = vmatpush1.xpose.msra.mxu0 0.0
    %479 = vmatprep.subr.mxu0 0.0
    %480 = vmatpush1.xpose.msra.mxu0 0.0
    %481 = vmatprep.subr.mxu0 0.0
    %482 = vmatpush1.xpose.msra.mxu0 0.0
    %483 = vmatprep.subr.mxu0 0.0
    %484 = vmatpush1.xpose.msra.mxu0 0.0
    %485 = vmatprep.subr.mxu0 0.0
    %486 = vmatpush1.xpose.msra.mxu0 0.0
    %487 = vmatprep.subr.mxu0 0.0
    %488 = vmatpush1.xpose.msra.mxu0 0.0
    %489 = vmatprep.subr.mxu0 0.0
    %490 = vmatpush1.xpose.msra.mxu0 0.0
    %491 = vmatprep.subr.mxu0 0.0
    %492 = vmatpush1.xpose.msra.mxu0 0.0
    %493 = vmatprep.subr.mxu0 0.0
    %494 = vmatpush1.xpose.msra.mxu0 0.0
    %495 = vmatprep.subr.mxu0 0.0
    %496 = vmatpush1.xpose.msra.mxu0 0.0
    %497 = vmatprep.subr.mxu0 0.0
    %498 = vmatpush1.xpose.msra.mxu0 0.0
    %499 = vmatprep.subr.mxu0 0.0
    %500 = vmatpush1.xpose.msra.mxu0 0.0
    %501 = vmatprep.subr.mxu0 0.0
    %502 = vmatpush1.xpose.msra.mxu0 0.0
    %503 = vmatprep.subr.mxu0 0.0
    %504 = vmatpush1.xpose.msra.mxu0 0.0
    %505 = vmatprep.subr.mxu0 0.0
    %506 = vmatpush1.xpose.msra.mxu0 0.0
    %507 = vmatprep.subr.mxu0 0.0
    %508 = vmatpush1.xpose.msra.mxu0 0.0
    %509 = vmatprep.subr.mxu0 0.0
    %510 = vmatpush1.xpose.msra.mxu0 0.0
    %511 = vmatprep.subr.mxu0 0.0
    %512 = vmatpush1.xpose.msra.mxu0 0.0
    %513 = vmatprep.subr.mxu0 0.0
    %514 = vmatpush1.xpose.msra.mxu0 0.0
    %515 = vmatprep.subr.mxu0 0.0
    %516 = vmatpush1.xpose.msra.mxu0 0.0
    %517 = vmatprep.subr.mxu0 0.0
    %518 = vmatpush1.xpose.msra.mxu0 0.0
    %519 = vmatprep.subr.mxu0 0.0
    %520 = vmatpush1.xpose.msra.mxu0 0.0
    %521 = vmatprep.subr.mxu0 0.0
    %522 = vmatpush1.xpose.msra.mxu0 0.0
    %523 = vmatprep.subr.mxu0 0.0
    %524 = vmatpush1.xpose.msra.mxu0 0.0
    %525 = vmatprep.mubr.f32.mxu0 0.0
    %526 = vmatmul.mubr.f32.gmra.mrb[0].mxu0 %v447
    %v527 = vpop.f32.mrb[0].mxu0
    %v528 = vadd.f32 %v358, %v527
    %v529 = vpop.f32.mrb[0].mxu0
    %530 = vdwg.mxu0
    %v531 = vsel %vm42, %v443, -inf
    %532 = vmax.xlane.f32.xlu0 %v531
    %v533 = vpop.xlane.xlu0 %532
    %v534 = vsel %vm42, %v528, -inf
    %535 = vmax.xlane.f32.xlu0 %v534
    %v536 = vpop.xlane.xlu0 %535
    %v537 = vsub.f32 %v443, %v533
    %v538 = vsub.f32 %v528, %v536
    %v539 = vmul.f32 %v537, 1.442695
    %v540 = vpow.pop %v539
    %v541 = vmul.f32 %v538, 1.442695
    %v542 = vpow.pop %v541
    %v544 = vsel %vm42, %v540, 0
    %v547 = vsel %vm42, %v542, 0
    %549 = vmatprep.subr.mxu0 0.0
    %550 = vmatpush1.msra.mxu0 %v308
    %551 = vmatprep.subr.mxu0 0.0
    %552 = vmatpush1.msra.mxu0 %v309
    %553 = vmatprep.subr.mxu0 0.0
    %554 = vmatpush1.msra.mxu0 %v310
    %555 = vmatprep.subr.mxu0 0.0
    %556 = vmatpush1.msra.mxu0 %v311
    %557 = vmatprep.subr.mxu0 0.0
    %558 = vmatpush1.msra.mxu0 0.0
    %559 = vmatprep.subr.mxu0 0.0
    %560 = vmatpush1.msra.mxu0 0.0
    %561 = vmatprep.subr.mxu0 0.0
    %562 = vmatpush1.msra.mxu0 0.0
    %563 = vmatprep.subr.mxu0 0.0
    %564 = vmatpush1.msra.mxu0 0.0
    %565 = vmatprep.subr.mxu0 0.0
    %566 = vmatpush1.msra.mxu0 0.0
    %567 = vmatprep.subr.mxu0 0.0
    %568 = vmatpush1.msra.mxu0 0.0
    %569 = vmatprep.subr.mxu0 0.0
    %570 = vmatpush1.msra.mxu0 0.0
    %571 = vmatprep.subr.mxu0 0.0
    %572 = vmatpush1.msra.mxu0 0.0
    %573 = vmatprep.subr.mxu0 0.0
    %574 = vmatpush1.msra.mxu0 0.0
    %575 = vmatprep.subr.mxu0 0.0
    %576 = vmatpush1.msra.mxu0 0.0
    %577 = vmatprep.subr.mxu0 0.0
    %578 = vmatpush1.msra.mxu0 0.0
    %579 = vmatprep.subr.mxu0 0.0
    %580 = vmatpush1.msra.mxu0 0.0
    %581 = vmatprep.subr.mxu0 0.0
    %582 = vmatpush1.msra.mxu0 0.0
    %583 = vmatprep.subr.mxu0 0.0
    %584 = vmatpush1.msra.mxu0 0.0
    %585 = vmatprep.subr.mxu0 0.0
    %586 = vmatpush1.msra.mxu0 0.0
    %587 = vmatprep.subr.mxu0 0.0
    %588 = vmatpush1.msra.mxu0 0.0
    %589 = vmatprep.subr.mxu0 0.0
    %590 = vmatpush1.msra.mxu0 0.0
    %591 = vmatprep.subr.mxu0 0.0
    %592 = vmatpush1.msra.mxu0 0.0
    %593 = vmatprep.subr.mxu0 0.0
    %594 = vmatpush1.msra.mxu0 0.0
    %595 = vmatprep.subr.mxu0 0.0
    %596 = vmatpush1.msra.mxu0 0.0
    %597 = vmatprep.subr.mxu0 0.0
    %598 = vmatpush1.msra.mxu0 0.0
    %599 = vmatprep.subr.mxu0 0.0
    %600 = vmatpush1.msra.mxu0 0.0
    %601 = vmatprep.subr.mxu0 0.0
    %602 = vmatpush1.msra.mxu0 0.0
    %603 = vmatprep.subr.mxu0 0.0
    %604 = vmatpush1.msra.mxu0 0.0
    %605 = vmatprep.subr.mxu0 0.0
    %606 = vmatpush1.msra.mxu0 0.0
    %607 = vmatprep.subr.mxu0 0.0
    %608 = vmatpush1.msra.mxu0 0.0
    %609 = vmatprep.subr.mxu0 0.0
    %610 = vmatpush1.msra.mxu0 0.0
    %611 = vmatprep.subr.mxu0 0.0
    %612 = vmatpush1.msra.mxu0 0.0
    %613 = vmatprep.mubr.f32.mxu0 0.0
    %614 = vmatmul.mubr.f32.gmra.mrb[0].mxu0 %v544
    %v615 = vpop.f32.mrb[0].mxu0
    %v616 = vadd.f32 0.0, %v615
    %v617 = vpop.f32.mrb[0].mxu0
    %618 = vmatprep.mubr.f32.mxu0 0.0
    %619 = vmatmul.mubr.f32.gmra.mrb[0].mxu0 %v547
    %v620 = vpop.f32.mrb[0].mxu0
    %v621 = vadd.f32 0.0, %v620
    %v622 = vpop.f32.mrb[0].mxu0
    %623 = vdwg.mxu0
    %v624 = vmax.f32 %v616, 1e-30
    %v625 = vmax.f32 %v621, 1e-30
    %v626 = vrcp.pop %v624
    %v627 = vrcp.pop %v625
    %v628 = vmul.f32 %v540, %v626
    %v629 = vmul.f32 %v542, %v627
    %v631 = vsel %vm42, %v628, 0
    %633 = vmatprep.subr.mxu0 0.0
    %634 = vmatpush1.msra.mxu0 %v320
    %635 = vmatprep.subr.mxu0 0.0
    %636 = vmatpush1.msra.mxu0 %v321
    %637 = vmatprep.subr.mxu0 0.0
    %638 = vmatpush1.msra.mxu0 %v322
    %639 = vmatprep.subr.mxu0 0.0
    %640 = vmatpush1.msra.mxu0 %v323
    %641 = vmatprep.subr.mxu0 0.0
    %642 = vmatpush1.msra.mxu0 0.0
    %643 = vmatprep.subr.mxu0 0.0
    %644 = vmatpush1.msra.mxu0 0.0
    %645 = vmatprep.subr.mxu0 0.0
    %646 = vmatpush1.msra.mxu0 0.0
    %647 = vmatprep.subr.mxu0 0.0
    %648 = vmatpush1.msra.mxu0 0.0
    %649 = vmatprep.subr.mxu0 0.0
    %650 = vmatpush1.msra.mxu0 0.0
    %651 = vmatprep.subr.mxu0 0.0
    %652 = vmatpush1.msra.mxu0 0.0
    %653 = vmatprep.subr.mxu0 0.0
    %654 = vmatpush1.msra.mxu0 0.0
    %655 = vmatprep.subr.mxu0 0.0
    %656 = vmatpush1.msra.mxu0 0.0
    %657 = vmatprep.subr.mxu0 0.0
    %658 = vmatpush1.msra.mxu0 0.0
    %659 = vmatprep.subr.mxu0 0.0
    %660 = vmatpush1.msra.mxu0 0.0
    %661 = vmatprep.subr.mxu0 0.0
    %662 = vmatpush1.msra.mxu0 0.0
    %663 = vmatprep.subr.mxu0 0.0
    %664 = vmatpush1.msra.mxu0 0.0
    %665 = vmatprep.subr.mxu0 0.0
    %666 = vmatpush1.msra.mxu0 0.0
    %667 = vmatprep.subr.mxu0 0.0
    %668 = vmatpush1.msra.mxu0 0.0
    %669 = vmatprep.subr.mxu0 0.0
    %670 = vmatpush1.msra.mxu0 0.0
    %671 = vmatprep.subr.mxu0 0.0
    %672 = vmatpush1.msra.mxu0 0.0
    %673 = vmatprep.subr.mxu0 0.0
    %674 = vmatpush1.msra.mxu0 0.0
    %675 = vmatprep.subr.mxu0 0.0
    %676 = vmatpush1.msra.mxu0 0.0
    %677 = vmatprep.subr.mxu0 0.0
    %678 = vmatpush1.msra.mxu0 0.0
    %679 = vmatprep.subr.mxu0 0.0
    %680 = vmatpush1.msra.mxu0 0.0
    %681 = vmatprep.subr.mxu0 0.0
    %682 = vmatpush1.msra.mxu0 0.0
    %683 = vmatprep.subr.mxu0 0.0
    %684 = vmatpush1.msra.mxu0 0.0
    %685 = vmatprep.subr.mxu0 0.0
    %686 = vmatpush1.msra.mxu0 0.0
    %687 = vmatprep.subr.mxu0 0.0
    %688 = vmatpush1.msra.mxu0 0.0
    %689 = vmatprep.subr.mxu0 0.0
    %690 = vmatpush1.msra.mxu0 0.0
    %691 = vmatprep.subr.mxu0 0.0
    %692 = vmatpush1.msra.mxu0 0.0
    %693 = vmatprep.subr.mxu0 0.0
    %694 = vmatpush1.msra.mxu0 0.0
    %695 = vmatprep.subr.mxu0 0.0
    %696 = vmatpush1.msra.mxu0 0.0
    %697 = vmatprep.mubr.f32.mxu0 0.0
    %698 = vmatmul.mubr.f32.gmra.mrb[0].mxu0 %v631
    %v699 = vpop.f32.mrb[0].mxu0
    %v700 = vadd.f32 0.0, %v699
    %v701 = vpop.f32.mrb[0].mxu0
    %702 = vdwg.mxu0
    %v704 = vsel %vm42, %v629, 0
    %706 = vmatprep.subr.mxu0 0.0
    %707 = vmatpush1.msra.mxu0 %v324
    %708 = vmatprep.subr.mxu0 0.0
    %709 = vmatpush1.msra.mxu0 %v325
    %710 = vmatprep.subr.mxu0 0.0
    %711 = vmatpush1.msra.mxu0 %v326
    %712 = vmatprep.subr.mxu0 0.0
    %713 = vmatpush1.msra.mxu0 %v327
    %714 = vmatprep.subr.mxu0 0.0
    %715 = vmatpush1.msra.mxu0 0.0
    %716 = vmatprep.subr.mxu0 0.0
    %717 = vmatpush1.msra.mxu0 0.0
    %718 = vmatprep.subr.mxu0 0.0
    %719 = vmatpush1.msra.mxu0 0.0
    %720 = vmatprep.subr.mxu0 0.0
    %721 = vmatpush1.msra.mxu0 0.0
    %722 = vmatprep.subr.mxu0 0.0
    %723 = vmatpush1.msra.mxu0 0.0
    %724 = vmatprep.subr.mxu0 0.0
    %725 = vmatpush1.msra.mxu0 0.0
    %726 = vmatprep.subr.mxu0 0.0
    %727 = vmatpush1.msra.mxu0 0.0
    %728 = vmatprep.subr.mxu0 0.0
    %729 = vmatpush1.msra.mxu0 0.0
    %730 = vmatprep.subr.mxu0 0.0
    %731 = vmatpush1.msra.mxu0 0.0
    %732 = vmatprep.subr.mxu0 0.0
    %733 = vmatpush1.msra.mxu0 0.0
    %734 = vmatprep.subr.mxu0 0.0
    %735 = vmatpush1.msra.mxu0 0.0
    %736 = vmatprep.subr.mxu0 0.0
    %737 = vmatpush1.msra.mxu0 0.0
    %738 = vmatprep.subr.mxu0 0.0
    %739 = vmatpush1.msra.mxu0 0.0
    %740 = vmatprep.subr.mxu0 0.0
    %741 = vmatpush1.msra.mxu0 0.0
    %742 = vmatprep.subr.mxu0 0.0
    %743 = vmatpush1.msra.mxu0 0.0
    %744 = vmatprep.subr.mxu0 0.0
    %745 = vmatpush1.msra.mxu0 0.0
    %746 = vmatprep.subr.mxu0 0.0
    %747 = vmatpush1.msra.mxu0 0.0
    %748 = vmatprep.subr.mxu0 0.0
    %749 = vmatpush1.msra.mxu0 0.0
    %750 = vmatprep.subr.mxu0 0.0
    %751 = vmatpush1.msra.mxu0 0.0
    %752 = vmatprep.subr.mxu0 0.0
    %753 = vmatpush1.msra.mxu0 0.0
    %754 = vmatprep.subr.mxu0 0.0
    %755 = vmatpush1.msra.mxu0 0.0
    %756 = vmatprep.subr.mxu0 0.0
    %757 = vmatpush1.msra.mxu0 0.0
    %758 = vmatprep.subr.mxu0 0.0
    %759 = vmatpush1.msra.mxu0 0.0
    %760 = vmatprep.subr.mxu0 0.0
    %761 = vmatpush1.msra.mxu0 0.0
    %762 = vmatprep.subr.mxu0 0.0
    %763 = vmatpush1.msra.mxu0 0.0
    %764 = vmatprep.subr.mxu0 0.0
    %765 = vmatpush1.msra.mxu0 0.0
    %766 = vmatprep.subr.mxu0 0.0
    %767 = vmatpush1.msra.mxu0 0.0
    %768 = vmatprep.subr.mxu0 0.0
    %769 = vmatpush1.msra.mxu0 0.0
    %770 = vmatprep.mubr.f32.mxu0 0.0
    %771 = vmatmul.mubr.f32.gmra.mrb[0].mxu0 %v704
    %v772 = vpop.f32.mrb[0].mxu0
    %v773 = vadd.f32 0.0, %v772
    %v774 = vpop.f32.mrb[0].mxu0
    %775 = vdwg.mxu0
    %s776 = scalar_lea.vmem %s1, 96
    %v777 = vld [vmem:[%s776] sm:$0xff]
    %v778 = vld [vmem:[%s776 + $0x8] sm:$0xff]
    %v779 = vld [vmem:[%s776 + $0x10] sm:$0xff]
    %v780 = vld [vmem:[%s776 + $0x18] sm:$0xff]
    %v781 = vlaneseq
    %v782 = vshrl.u32 %v781, 7
    %v783 = vsub.s32 0, %v782
    %v784 = vrot.slane %v26, %v783
    %v786 = vsel %vm42, %v700, 0
    %v789 = vsel %vm42, %v773, 0
    %791 = vmatprep.subr.mxu0 0.0
    %792 = vmatpush1.msra.mxu0 %v777
    %793 = vmatprep.subr.mxu0 0.0
    %794 = vmatpush1.msra.mxu0 %v778
    %795 = vmatprep.subr.mxu0 0.0
    %796 = vmatpush1.msra.mxu0 %v779
    %797 = vmatprep.subr.mxu0 0.0
    %798 = vmatpush1.msra.mxu0 %v780
    %799 = vmatprep.subr.mxu0 0.0
    %800 = vmatpush1.msra.mxu0 0.0
    %801 = vmatprep.subr.mxu0 0.0
    %802 = vmatpush1.msra.mxu0 0.0
    %803 = vmatprep.subr.mxu0 0.0
    %804 = vmatpush1.msra.mxu0 0.0
    %805 = vmatprep.subr.mxu0 0.0
    %806 = vmatpush1.msra.mxu0 0.0
    %807 = vmatprep.subr.mxu0 0.0
    %808 = vmatpush1.msra.mxu0 0.0
    %809 = vmatprep.subr.mxu0 0.0
    %810 = vmatpush1.msra.mxu0 0.0
    %811 = vmatprep.subr.mxu0 0.0
    %812 = vmatpush1.msra.mxu0 0.0
    %813 = vmatprep.subr.mxu0 0.0
    %814 = vmatpush1.msra.mxu0 0.0
    %815 = vmatprep.subr.mxu0 0.0
    %816 = vmatpush1.msra.mxu0 0.0
    %817 = vmatprep.subr.mxu0 0.0
    %818 = vmatpush1.msra.mxu0 0.0
    %819 = vmatprep.subr.mxu0 0.0
    %820 = vmatpush1.msra.mxu0 0.0
    %821 = vmatprep.subr.mxu0 0.0
    %822 = vmatpush1.msra.mxu0 0.0
    %823 = vmatprep.subr.mxu0 0.0
    %824 = vmatpush1.msra.mxu0 0.0
    %825 = vmatprep.subr.mxu0 0.0
    %826 = vmatpush1.msra.mxu0 0.0
    %827 = vmatprep.subr.mxu0 0.0
    %828 = vmatpush1.msra.mxu0 0.0
    %829 = vmatprep.subr.mxu0 0.0
    %830 = vmatpush1.msra.mxu0 0.0
    %831 = vmatprep.subr.mxu0 0.0
    %832 = vmatpush1.msra.mxu0 0.0
    %833 = vmatprep.subr.mxu0 0.0
    %834 = vmatpush1.msra.mxu0 0.0
    %835 = vmatprep.subr.mxu0 0.0
    %836 = vmatpush1.msra.mxu0 0.0
    %837 = vmatprep.subr.mxu0 0.0
    %838 = vmatpush1.msra.mxu0 0.0
    %839 = vmatprep.subr.mxu0 0.0
    %840 = vmatpush1.msra.mxu0 0.0
    %841 = vmatprep.subr.mxu0 0.0
    %842 = vmatpush1.msra.mxu0 0.0
    %843 = vmatprep.subr.mxu0 0.0
    %844 = vmatpush1.msra.mxu0 0.0
    %845 = vmatprep.subr.mxu0 0.0
    %846 = vmatpush1.msra.mxu0 0.0
    %847 = vmatprep.subr.mxu0 0.0
    %848 = vmatpush1.msra.mxu0 0.0
    %849 = vmatprep.subr.mxu0 0.0
    %850 = vmatpush1.msra.mxu0 0.0
    %851 = vmatprep.subr.mxu0 0.0
    %852 = vmatpush1.msra.mxu0 0.0
    %853 = vmatprep.subr.mxu0 0.0
    %854 = vmatpush1.msra.mxu0 0.0
    %855 = vmatprep.mubr.f32.mxu0 0.0
    %856 = vmatmul.mubr.f32.gmra.mrb[0].mxu0 %v786
    %v857 = vpop.f32.mrb[0].mxu0
    %v858 = vadd.f32 %v784, %v857
    %v859 = vpop.f32.mrb[0].mxu0
    %860 = vmatprep.mubr.f32.mxu0 0.0
    %861 = vmatmul.mubr.f32.gmra.mrb[0].mxu0 %v789
    %v862 = vpop.f32.mrb[0].mxu0
    %v863 = vadd.f32 %v784, %v862
    %v864 = vpop.f32.mrb[0].mxu0
    %865 = vdwg.mxu0
    %v866 = vadd.f32 %v21, %v858
    %v867 = vadd.f32 %v22, %v863
    %v868 = vsel %vm42, %v866, 0.0
    %869 = vadd.xlane.f32.xlu0 %v868
    %v870 = vpop.xlane.xlu0 %869
    %v871 = vsel %vm42, %v867, 0.0
    %872 = vadd.xlane.f32.xlu0 %v871
    %v873 = vpop.xlane.xlu0 %872
    %v874 = vrcp.pop 32.0
    %v875 = vmul.f32 %v870, %v874
    %v876 = vmul.f32 %v873, %v874
    %v877 = vsub.f32 %v866, %v875
    %v878 = vsub.f32 %v867, %v876
    %v879 = vmul.f32 %v877, %v877
    %v880 = vmul.f32 %v878, %v878
    %v881 = vsel %vm42, %v879, 0.0
    %882 = vadd.xlane.f32.xlu0 %v881
    %v883 = vpop.xlane.xlu0 %882
    %v884 = vsel %vm42, %v880, 0.0
    %885 = vadd.xlane.f32.xlu0 %v884
    %v886 = vpop.xlane.xlu0 %885
    %v887 = vmul.f32 %v883, %v874
    %v888 = vmul.f32 %v886, %v874
    %v889 = vadd.f32 %v887, 1e-05
    %v890 = vadd.f32 %v888, 1e-05
    %v891 = vrsqrt.pop %v889
    %v892 = vrsqrt.pop %v890
    %v893 = vmul.f32 %v877, %v891
    %v894 = vmul.f32 %v878, %v892
    %v895 = vlaneseq
    %v896 = vshrl.u32 %v895, 7
    %v897 = vsub.s32 0, %v896
    %v898 = vrot.slane %v29, %v897
    %v899 = vmul.f32 %v893, %v898
    %v900 = vmul.f32 %v894, %v898
    %v901 = vlaneseq
    %v902 = vshrl.u32 %v901, 7
    %v903 = vsub.s32 0, %v902
    %v904 = vrot.slane %v30, %v903
    %v905 = vadd.f32 %v899, %v904
    %v906 = vadd.f32 %v900, %v904
    %v907 = vld [vmem:[%s2] sm:$0xff]
    %v908 = vld [vmem:[%s2 + $0x8] sm:$0xff]
    %v909 = vld [vmem:[%s2 + $0x10] sm:$0xff]
    %v910 = vld [vmem:[%s2 + $0x18] sm:$0xff]
    %v911 = vlaneseq
    %v912 = vshrl.u32 %v911, 7
    %v913 = vsub.s32 0, %v912
    %v914 = vrot.slane %v27, %v913
    %v916 = vsel %vm42, %v905, 0
    %v919 = vsel %vm42, %v906, 0
    %921 = vmatprep.subr.mxu0 0.0
    %922 = vmatpush1.msra.mxu0 %v907
    %923 = vmatprep.subr.mxu0 0.0
    %924 = vmatpush1.msra.mxu0 %v908
    %925 = vmatprep.subr.mxu0 0.0
    %926 = vmatpush1.msra.mxu0 %v909
    %927 = vmatprep.subr.mxu0 0.0
    %928 = vmatpush1.msra.mxu0 %v910
    %929 = vmatprep.subr.mxu0 0.0
    %930 = vmatpush1.msra.mxu0 0.0
    %931 = vmatprep.subr.mxu0 0.0
    %932 = vmatpush1.msra.mxu0 0.0
    %933 = vmatprep.subr.mxu0 0.0
    %934 = vmatpush1.msra.mxu0 0.0
    %935 = vmatprep.subr.mxu0 0.0
    %936 = vmatpush1.msra.mxu0 0.0
    %937 = vmatprep.subr.mxu0 0.0
    %938 = vmatpush1.msra.mxu0 0.0
    %939 = vmatprep.subr.mxu0 0.0
    %940 = vmatpush1.msra.mxu0 0.0
    %941 = vmatprep.subr.mxu0 0.0
    %942 = vmatpush1.msra.mxu0 0.0
    %943 = vmatprep.subr.mxu0 0.0
    %944 = vmatpush1.msra.mxu0 0.0
    %945 = vmatprep.subr.mxu0 0.0
    %946 = vmatpush1.msra.mxu0 0.0
    %947 = vmatprep.subr.mxu0 0.0
    %948 = vmatpush1.msra.mxu0 0.0
    %949 = vmatprep.subr.mxu0 0.0
    %950 = vmatpush1.msra.mxu0 0.0
    %951 = vmatprep.subr.mxu0 0.0
    %952 = vmatpush1.msra.mxu0 0.0
    %953 = vmatprep.subr.mxu0 0.0
    %954 = vmatpush1.msra.mxu0 0.0
    %955 = vmatprep.subr.mxu0 0.0
    %956 = vmatpush1.msra.mxu0 0.0
    %957 = vmatprep.subr.mxu0 0.0
    %958 = vmatpush1.msra.mxu0 0.0
    %959 = vmatprep.subr.mxu0 0.0
    %960 = vmatpush1.msra.mxu0 0.0
    %961 = vmatprep.subr.mxu0 0.0
    %962 = vmatpush1.msra.mxu0 0.0
    %963 = vmatprep.subr.mxu0 0.0
    %964 = vmatpush1.msra.mxu0 0.0
    %965 = vmatprep.subr.mxu0 0.0
    %966 = vmatpush1.msra.mxu0 0.0
    %967 = vmatprep.subr.mxu0 0.0
    %968 = vmatpush1.msra.mxu0 0.0
    %969 = vmatprep.subr.mxu0 0.0
    %970 = vmatpush1.msra.mxu0 0.0
    %971 = vmatprep.subr.mxu0 0.0
    %972 = vmatpush1.msra.mxu0 0.0
    %973 = vmatprep.subr.mxu0 0.0
    %974 = vmatpush1.msra.mxu0 0.0
    %975 = vmatprep.subr.mxu0 0.0
    %976 = vmatpush1.msra.mxu0 0.0
    %977 = vmatprep.subr.mxu0 0.0
    %978 = vmatpush1.msra.mxu0 0.0
    %979 = vmatprep.subr.mxu0 0.0
    %980 = vmatpush1.msra.mxu0 0.0
    %981 = vmatprep.subr.mxu0 0.0
    %982 = vmatpush1.msra.mxu0 0.0
    %983 = vmatprep.subr.mxu0 0.0
    %984 = vmatpush1.msra.mxu0 0.0
    %985 = vmatprep.mubr.f32.mxu0 0.0
    %986 = vmatmul.mubr.f32.gmra.mrb[0].mxu0 %v916
    %v987 = vpop.f32.mrb[0].mxu0
    %v988 = vadd.f32 %v914, %v987
    %v989 = vpop.f32.mrb[0].mxu0
    %990 = vmatprep.mubr.f32.mxu0 0.0
    %991 = vmatmul.mubr.f32.gmra.mrb[0].mxu0 %v919
    %v992 = vpop.f32.mrb[0].mxu0
    %v993 = vadd.f32 %v914, %v992
    %v994 = vpop.f32.mrb[0].mxu0
    %995 = vdwg.mxu0
    %v996 = vmax.f32 %v988, 0.0
    %v997 = vmax.f32 %v993, 0.0
    %v998 = vld [vmem:[%s3] sm:$0xff]
    %v999 = vld [vmem:[%s3 + $0x8] sm:$0xff]
    %v1000 = vld [vmem:[%s3 + $0x10] sm:$0xff]
    %v1001 = vld [vmem:[%s3 + $0x18] sm:$0xff]
    %v1002 = vld [vmem:[%s3 + $0x20] sm:$0xff]
    %v1003 = vld [vmem:[%s3 + $0x28] sm:$0xff]
    %v1004 = vld [vmem:[%s3 + $0x30] sm:$0xff]
    %v1005 = vld [vmem:[%s3 + $0x38] sm:$0xff]
    %v1006 = vld [vmem:[%s3 + $0x40] sm:$0xff]
    %v1007 = vld [vmem:[%s3 + $0x48] sm:$0xff]
    %v1008 = vld [vmem:[%s3 + $0x50] sm:$0xff]
    %v1009 = vld [vmem:[%s3 + $0x58] sm:$0xff]
    %v1010 = vld [vmem:[%s3 + $0x60] sm:$0xff]
    %v1011 = vld [vmem:[%s3 + $0x68] sm:$0xff]
    %v1012 = vld [vmem:[%s3 + $0x70] sm:$0xff]
    %v1013 = vld [vmem:[%s3 + $0x78] sm:$0xff]
    %v1014 = vlaneseq
    %v1015 = vshrl.u32 %v1014, 7
    %v1016 = vsub.s32 0, %v1015
    %v1017 = vrot.slane %v28, %v1016
    %1018 = vmatprep.subr.mxu0 0.0
    %1019 = vmatpush1.msra.mxu0 %v998
    %1020 = vmatprep.subr.mxu0 0.0
    %1021 = vmatpush1.msra.mxu0 %v999
    %1022 = vmatprep.subr.mxu0 0.0
    %1023 = vmatpush1.msra.mxu0 %v1000
    %1024 = vmatprep.subr.mxu0 0.0
    %1025 = vmatpush1.msra.mxu0 %v1001
    %1026 = vmatprep.subr.mxu0 0.0
    %1027 = vmatpush1.msra.mxu0 %v1002
    %1028 = vmatprep.subr.mxu0 0.0
    %1029 = vmatpush1.msra.mxu0 %v1003
    %1030 = vmatprep.subr.mxu0 0.0
    %1031 = vmatpush1.msra.mxu0 %v1004
    %1032 = vmatprep.subr.mxu0 0.0
    %1033 = vmatpush1.msra.mxu0 %v1005
    %1034 = vmatprep.subr.mxu0 0.0
    %1035 = vmatpush1.msra.mxu0 %v1006
    %1036 = vmatprep.subr.mxu0 0.0
    %1037 = vmatpush1.msra.mxu0 %v1007
    %1038 = vmatprep.subr.mxu0 0.0
    %1039 = vmatpush1.msra.mxu0 %v1008
    %1040 = vmatprep.subr.mxu0 0.0
    %1041 = vmatpush1.msra.mxu0 %v1009
    %1042 = vmatprep.subr.mxu0 0.0
    %1043 = vmatpush1.msra.mxu0 %v1010
    %1044 = vmatprep.subr.mxu0 0.0
    %1045 = vmatpush1.msra.mxu0 %v1011
    %1046 = vmatprep.subr.mxu0 0.0
    %1047 = vmatpush1.msra.mxu0 %v1012
    %1048 = vmatprep.subr.mxu0 0.0
    %1049 = vmatpush1.msra.mxu0 %v1013
    %1050 = vmatprep.subr.mxu0 0.0
    %1051 = vmatpush1.msra.mxu0 0.0
    %1052 = vmatprep.subr.mxu0 0.0
    %1053 = vmatpush1.msra.mxu0 0.0
    %1054 = vmatprep.subr.mxu0 0.0
    %1055 = vmatpush1.msra.mxu0 0.0
    %1056 = vmatprep.subr.mxu0 0.0
    %1057 = vmatpush1.msra.mxu0 0.0
    %1058 = vmatprep.subr.mxu0 0.0
    %1059 = vmatpush1.msra.mxu0 0.0
    %1060 = vmatprep.subr.mxu0 0.0
    %1061 = vmatpush1.msra.mxu0 0.0
    %1062 = vmatprep.subr.mxu0 0.0
    %1063 = vmatpush1.msra.mxu0 0.0
    %1064 = vmatprep.subr.mxu0 0.0
    %1065 = vmatpush1.msra.mxu0 0.0
    %1066 = vmatprep.subr.mxu0 0.0
    %1067 = vmatpush1.msra.mxu0 0.0
    %1068 = vmatprep.subr.mxu0 0.0
    %1069 = vmatpush1.msra.mxu0 0.0
    %1070 = vmatprep.subr.mxu0 0.0
    %1071 = vmatpush1.msra.mxu0 0.0
    %1072 = vmatprep.subr.mxu0 0.0
    %1073 = vmatpush1.msra.mxu0 0.0
    %1074 = vmatprep.subr.mxu0 0.0
    %1075 = vmatpush1.msra.mxu0 0.0
    %1076 = vmatprep.subr.mxu0 0.0
    %1077 = vmatpush1.msra.mxu0 0.0
    %1078 = vmatprep.subr.mxu0 0.0
    %1079 = vmatpush1.msra.mxu0 0.0
    %1080 = vmatprep.subr.mxu0 0.0
    %1081 = vmatpush1.msra.mxu0 0.0
    %1082 = vmatprep.mubr.f32.mxu0 0.0
    %1083 = vmatmul.mubr.f32.gmra.mrb[0].mxu0 %v996
    %v1084 = vpop.f32.mrb[0].mxu0
    %v1085 = vadd.f32 %v1017, %v1084
    %v1086 = vpop.f32.mrb[0].mxu0
    %1087 = vmatprep.mubr.f32.mxu0 0.0
    %1088 = vmatmul.mubr.f32.gmra.mrb[0].mxu0 %v997
    %v1089 = vpop.f32.mrb[0].mxu0
    %v1090 = vadd.f32 %v1017, %v1089
    %v1091 = vpop.f32.mrb[0].mxu0
    %1092 = vdwg.mxu0
    %v1093 = vadd.f32 %v905, %v1085
    %v1094 = vadd.f32 %v906, %v1090
    %v1095 = vsel %vm42, %v1093, 0.0
    %1096 = vadd.xlane.f32.xlu0 %v1095
    %v1097 = vpop.xlane.xlu0 %1096
    %v1098 = vsel %vm42, %v1094, 0.0
    %1099 = vadd.xlane.f32.xlu0 %v1098
    %v1100 = vpop.xlane.xlu0 %1099
    %v1101 = vmul.f32 %v1097, %v874
    %v1102 = vmul.f32 %v1100, %v874
    %v1103 = vsub.f32 %v1093, %v1101
    %v1104 = vsub.f32 %v1094, %v1102
    %v1105 = vmul.f32 %v1103, %v1103
    %v1106 = vmul.f32 %v1104, %v1104
    %v1107 = vsel %vm42, %v1105, 0.0
    %1108 = vadd.xlane.f32.xlu0 %v1107
    %v1109 = vpop.xlane.xlu0 %1108
    %v1110 = vsel %vm42, %v1106, 0.0
    %1111 = vadd.xlane.f32.xlu0 %v1110
    %v1112 = vpop.xlane.xlu0 %1111
    %v1113 = vmul.f32 %v1109, %v874
    %v1114 = vmul.f32 %v1112, %v874
    %v1115 = vadd.f32 %v1113, 1e-05
    %v1116 = vadd.f32 %v1114, 1e-05
    %v1117 = vrsqrt.pop %v1115
    %v1118 = vrsqrt.pop %v1116
    %v1119 = vmul.f32 %v1103, %v1117
    %v1120 = vmul.f32 %v1104, %v1118
    %v1121 = vlaneseq
    %v1122 = vshrl.u32 %v1121, 7
    %v1123 = vsub.s32 0, %v1122
    %v1124 = vrot.slane %v31, %v1123
    %v1125 = vmul.f32 %v1119, %v1124
    %v1126 = vmul.f32 %v1120, %v1124
    %v1127 = vlaneseq
    %v1128 = vshrl.u32 %v1127, 7
    %v1129 = vsub.s32 0, %v1128
    %v1130 = vrot.slane %v32, %v1129
    %v1131 = vadd.f32 %v1125, %v1130
    %v1132 = vadd.f32 %v1126, %v1130
    %1133 = vst.msk [vmem:[#allocation2] sm:$0xff] %vm42, %v1131
    %1134 = vst.msk [vmem:[#allocation2 + $0x8] sm:$0xff] %vm42, %v1132
    // Predicated region
    $region22: #{encoder_layer.1} parent=1 // pred_check
      _
    $region23: #{encoder_layer.1} parent=1 // pred_check_branch
      %1136 = sbr.rel (0) target = $region25
    $region24: #{encoder_layer.1} parent=1 // pred_region
      %s1138 = ssub.s32 256, 256
      %1139 = vsyncadd [#allocation3], %s1138
      %s1140 = sshll.u32 [#allocation2], 4
      %s1141 = int_to_ptr.vmem [resolvable:$true] %s1140
      %1146 = dma.vmem_to_hbm [thread:$0]  %s1141, 256, %s5, [#allocation3], 128, 128, 8
    $region25: #{encoder_layer.1} parent=1 // pred_fallthru
      _
    // Predicated region
    $region26: #{encoder_layer.1} parent=1 // pred_check
      _
    $region27: #{encoder_layer.1} parent=1 // pred_check_branch
      %1148 = sbr.rel (0) target = $region29
    $region28: #{encoder_layer.1} parent=1 // pred_region
      %1149 = dma.done [#allocation3], 256
    $region29: #{encoder_layer.1} parent=1 // pred_fallthru
      _
    %1150 = vsyncpa [#allocation3], 1

</llo_original>
